<compile_context>
chip_gen: v7x
topology: tpu7x:2x2x1
jax: 0.10.0
libtpu: 0.0.40
codegen_flags: <defaults>
</compile_context>

<pallas_src>
import jax
import jax.numpy as jnp
from jax import lax
from jax.experimental import pallas as pl
from jax.experimental.pallas import tpu as pltpu

EPS = 1e-5  # torch.nn.BatchNorm2d default


# ------------------------------ kernel ------------------------------------ #

def fused_conv_bn_relu_kernel(p_ref, w_ref, gamma_ref, beta_ref, out_ref, y_ref):
    # p_ref     : (P, K)    bf16 im2col patches, P = N*H*W, K = 9*Cin
    # w_ref     : (K, Cout) bf16 conv weight reshaped to matmul form
    # gamma_ref : (1, Cout) f32
    # beta_ref  : (1, Cout) f32
    # out_ref   : (P, Cout) f32
    # y_ref     : (P, Cout) f32 VMEM scratch holding the conv output
    P = out_ref.shape[0]
    Cout = out_ref.shape[1]

    # Conv as one MXU matmul (f32 accumulation), result parked in VMEM scratch.
    y_ref[...] = jnp.dot(p_ref[...], w_ref[...],
                         preferred_element_type=jnp.float32)

    # Per-channel sum and sum-of-squares in one chunked pass over y
    # (keeps live vregs small instead of holding all of y + y^2 at once).
    CHUNK = 32
    zeros = jnp.zeros((1, Cout), jnp.float32)
    if P % CHUNK == 0 and P > CHUNK:
        n_chunks = P // CHUNK

        def body(i, carry):
            s, ss = carry
            yc = y_ref[pl.ds(i * CHUNK, CHUNK), :]
            return (s + jnp.sum(yc, axis=0, keepdims=True),
                    ss + jnp.sum(yc * yc, axis=0, keepdims=True))

        s, ss = lax.fori_loop(0, n_chunks, body, (zeros, zeros), unroll=True)
    else:
        y = y_ref[...]
        s = jnp.sum(y, axis=0, keepdims=True)
        ss = jnp.sum(y * y, axis=0, keepdims=True)

    inv_p = 1.0 / P
    mean = s * inv_p
    var = ss * inv_p - mean * mean            # biased variance (matches torch BN)
    scale = gamma_ref[...] * lax.rsqrt(var + EPS)
    shift = beta_ref[...] - mean * scale

    # Normalize + ReLU in a single FMA pass over y.
    out_ref[...] = jnp.maximum(y_ref[...] * scale + shift, 0.0)


# ------------------------------ wrapper ------------------------------------ #

def layer6_forward(x_nchw, w_oihw, conv_bias, gamma, beta):
    N, Cin, H, W = x_nchw.shape
    Cout, _, KH, KW = w_oihw.shape
    P = N * H * W
    K = KH * KW * Cin

    # Layout plumbing in plain JAX: NCHW -> NHWC, pad, im2col, OIHW -> (K, Cout).
    x_nhwc = jnp.transpose(x_nchw, (0, 2, 3, 1)).astype(jnp.float32)
    xpad = jnp.pad(x_nhwc, ((0, 0), (1, 1), (1, 1), (0, 0)))
    taps = [xpad[:, kh:kh + H, kw:kw + W, :]
            for kh in range(KH) for kw in range(KW)]
    patches = jnp.concatenate(taps, axis=-1).reshape(P, K)      # (P, 9*Cin)

    w_hwio = jnp.transpose(w_oihw, (2, 3, 1, 0)).astype(jnp.float32)  # (KH,KW,Cin,Cout)
    w_mat = w_hwio.reshape(K, Cout)                                    # matches tap order

    # The per-channel conv bias is exactly cancelled by training-mode BN mean
    # subtraction -> drop it (mathematical no-op, saves a DMA + VPU add).
    del conv_bias

    # bf16 inputs for the MXU, f32 accumulation inside the kernel.
    patches_bf = patches.astype(jnp.bfloat16)
    w_bf = w_mat.astype(jnp.bfloat16)

    out_flat = pl.pallas_call(
        fused_conv_bn_relu_kernel,
        out_shape=jax.ShapeDtypeStruct((P, Cout), jnp.float32),
        grid=(1,),
        in_specs=[
            pl.BlockSpec((P, K), lambda i: (0, 0)),
            pl.BlockSpec((K, Cout), lambda i: (0, 0)),
            pl.BlockSpec((1, Cout), lambda i: (0, 0)),
            pl.BlockSpec((1, Cout), lambda i: (0, 0)),
        ],
        out_specs=pl.BlockSpec((P, Cout), lambda i: (0, 0)),
        scratch_shapes=[pltpu.VMEM((P, Cout), jnp.float32)],
        compiler_params=pltpu.CompilerParams(
            dimension_semantics=("arbitrary",)),
    )(patches_bf, w_bf,
      gamma.reshape(1, Cout).astype(jnp.float32),
      beta.reshape(1, Cout).astype(jnp.float32))

    out_nhwc = out_flat.reshape(N, H, W, Cout)
    return jnp.transpose(out_nhwc, (0, 3, 1, 2))  # back to NCHW


# ----------------------------- reference ----------------------------------- #

def layer6_reference(x_nchw, w_oihw, conv_bias, gamma, beta):
    x_nhwc = jnp.transpose(x_nchw, (0, 2, 3, 1))
    w_hwio = jnp.transpose(w_oihw, (2, 3, 1, 0))
    y = lax.conv_general_dilated(
        x_nhwc, w_hwio, window_strides=(1, 1), padding=((1, 1), (1, 1)),
        dimension_numbers=("NHWC", "HWIO", "NHWC"),
        preferred_element_type=jnp.float32)
    y = y + conv_bias.reshape(1, 1, 1, -1)
    mean = jnp.mean(y, axis=(0, 1, 2), keepdims=True)
    var = jnp.mean((y - mean) ** 2, axis=(0, 1, 2), keepdims=True)
    y = (y - mean) * lax.rsqrt(var + EPS) * gamma.reshape(1, 1, 1, -1) \
        + beta.reshape(1, 1, 1, -1)
    y = jnp.maximum(y, 0.0)
    return jnp.transpose(y, (0, 3, 1, 2))


# -------------------------------- main -------------------------------------- #

if __name__ == "__main__":
    N, Cin, Cout, H, W = 2, 128, 256, 8, 8   # Cin/Cout fixed by the module

    key = jax.random.PRNGKey(0)
    kx, kw, kb, kg, kbeta = jax.random.split(key, 5)

    x = jax.random.normal(kx, (N, Cin, H, W), dtype=jnp.float32)
    conv_w = 0.05 * jax.random.normal(kw, (Cout, Cin, 3, 3), dtype=jnp.float32)
    conv_b = 0.1 * jax.random.normal(kb, (Cout,), dtype=jnp.float32)
    gamma = 1.0 + 0.1 * jax.random.normal(kg, (Cout,), dtype=jnp.float32)
    beta = 0.1 * jax.random.normal(kbeta, (Cout,), dtype=jnp.float32)

    out = jax.block_until_ready(layer6_forward(x, conv_w, conv_b, gamma, beta))
    ref = jax.block_until_ready(layer6_reference(x, conv_w, conv_b, gamma, beta))

    assert out.shape == (N, Cout, H, W), out.shape
    # bf16 MXU inputs over K=1152 accumulate ~1e-2 absolute error -> slightly
    # relaxed atol vs. pure-f32 path; rtol stays at 1e-2.
    assert jnp.allclose(out, ref, rtol=1e-2, atol=2e-2), \
        float(jnp.max(jnp.abs(out - ref)))

    print("KERNEL_OK")
</pallas_src>

<mosaic_0001>
module attributes {stable_mosaic.version = 11 : i64} {
  func.func @fused_conv_bn_relu_kernel(%arg0: i32, %arg1: memref<128x1152xbf16, #tpu.memory_space<vmem>>, %arg2: memref<1152x256xbf16, #tpu.memory_space<vmem>>, %arg3: memref<1x256xf32, #tpu.memory_space<vmem>>, %arg4: memref<1x256xf32, #tpu.memory_space<vmem>>, %arg5: memref<128x256xf32, #tpu.memory_space<vmem>>, %arg6: memref<128x256xf32, #tpu.memory_space<vmem>>) attributes {dimension_semantics = [#tpu.dimension_semantics<arbitrary>], iteration_bounds = array<i64: 1>, scalar_prefetch = 0 : i64, scratch_operands = 1 : i64, tpu.core_type = #tpu.core_type<tc>, window_params = [{pipeline_mode = #tpu.pipeline_mode<synchronous>, transform_indices = @transform_0, window_bounds = array<i64: 128, 1152>}, {pipeline_mode = #tpu.pipeline_mode<synchronous>, transform_indices = @transform_1, window_bounds = array<i64: 1152, 256>}, {pipeline_mode = #tpu.pipeline_mode<synchronous>, transform_indices = @transform_2, window_bounds = array<i64: 1, 256>}, {pipeline_mode = #tpu.pipeline_mode<synchronous>, transform_indices = @transform_3, window_bounds = array<i64: 1, 256>}, {pipeline_mode = #tpu.pipeline_mode<synchronous>, transform_indices = @transform_4, window_bounds = array<i64: 128, 256>}]} {
    %c0 = arith.constant 0 : index
    %c0_0 = arith.constant 0 : index
    %0 = vector.load %arg1[%c0, %c0_0] : memref<128x1152xbf16, #tpu.memory_space<vmem>>, vector<128x1152xbf16>
    %c0_1 = arith.constant 0 : index
    %c0_2 = arith.constant 0 : index
    %1 = vector.load %arg2[%c0_1, %c0_2] : memref<1152x256xbf16, #tpu.memory_space<vmem>>, vector<1152x256xbf16>
    %cst = arith.constant dense<0.000000e+00> : vector<128x256xf32>
    %2 = tpu.matmul %0, %1, %cst {dimension_numbers = #tpu.dot_dimension_numbers<[1], [0], [0], [1], [0, 0, 1, 1], [], []>} : vector<128x1152xbf16>, vector<1152x256xbf16>, vector<128x256xf32> -> vector<128x256xf32>
    %c0_3 = arith.constant 0 : index
    %c0_4 = arith.constant 0 : index
    %3 = vector.load %arg6[%c0_3, %c0_4] : memref<128x256xf32, #tpu.memory_space<vmem>>, vector<128x256xf32>
    tpu.vector_store %arg6[%c0_3, %c0_4], %2 {strides = array<i32>} : memref<128x256xf32, #tpu.memory_space<vmem>>, vector<128x256xf32>,
    %cst_5 = arith.constant 0.000000e+00 : f32
    %4 = vector.broadcast %cst_5 : f32 to vector<1x256xf32>
    %c0_i32 = arith.constant 0 : i32
    %c32_i32 = arith.constant 32 : i32
    %5 = arith.muli %c0_i32, %c32_i32 : i32
    %6 = arith.index_cast %5 : i32 to index
    %c0_6 = arith.constant 0 : index
    %7 = vector.load %arg6[%6, %c0_6] : memref<128x256xf32, #tpu.memory_space<vmem>>, vector<32x256xf32>
    %cst_7 = arith.constant dense<0.000000e+00> : vector<256xf32>
    %8 = vector.multi_reduction <add>, %7, %cst_7 [0] : vector<32x256xf32> to vector<256xf32>
    %9 = vector.shape_cast %8 : vector<256xf32> to vector<1x256xf32>
    %10 = arith.addf %4, %9 : vector<1x256xf32>
    %11 = arith.mulf %7, %7 : vector<32x256xf32>
    %cst_8 = arith.constant dense<0.000000e+00> : vector<256xf32>
    %12 = vector.multi_reduction <add>, %11, %cst_8 [0] : vector<32x256xf32> to vector<256xf32>
    %13 = vector.shape_cast %12 : vector<256xf32> to vector<1x256xf32>
    %14 = arith.addf %4, %13 : vector<1x256xf32>
    %c1_i32 = arith.constant 1 : i32
    %c32_i32_9 = arith.constant 32 : i32
    %15 = arith.muli %c1_i32, %c32_i32_9 : i32
    %16 = arith.index_cast %15 : i32 to index
    %c0_10 = arith.constant 0 : index
    %17 = vector.load %arg6[%16, %c0_10] : memref<128x256xf32, #tpu.memory_space<vmem>>, vector<32x256xf32>
    %cst_11 = arith.constant dense<0.000000e+00> : vector<256xf32>
    %18 = vector.multi_reduction <add>, %17, %cst_11 [0] : vector<32x256xf32> to vector<256xf32>
    %19 = vector.shape_cast %18 : vector<256xf32> to vector<1x256xf32>
    %20 = arith.addf %10, %19 : vector<1x256xf32>
    %21 = arith.mulf %17, %17 : vector<32x256xf32>
    %cst_12 = arith.constant dense<0.000000e+00> : vector<256xf32>
    %22 = vector.multi_reduction <add>, %21, %cst_12 [0] : vector<32x256xf32> to vector<256xf32>
    %23 = vector.shape_cast %22 : vector<256xf32> to vector<1x256xf32>
    %24 = arith.addf %14, %23 : vector<1x256xf32>
    %c2_i32 = arith.constant 2 : i32
    %c32_i32_13 = arith.constant 32 : i32
    %25 = arith.muli %c2_i32, %c32_i32_13 : i32
    %26 = arith.index_cast %25 : i32 to index
    %c0_14 = arith.constant 0 : index
    %27 = vector.load %arg6[%26, %c0_14] : memref<128x256xf32, #tpu.memory_space<vmem>>, vector<32x256xf32>
    %cst_15 = arith.constant dense<0.000000e+00> : vector<256xf32>
    %28 = vector.multi_reduction <add>, %27, %cst_15 [0] : vector<32x256xf32> to vector<256xf32>
    %29 = vector.shape_cast %28 : vector<256xf32> to vector<1x256xf32>
    %30 = arith.addf %20, %29 : vector<1x256xf32>
    %31 = arith.mulf %27, %27 : vector<32x256xf32>
    %cst_16 = arith.constant dense<0.000000e+00> : vector<256xf32>
    %32 = vector.multi_reduction <add>, %31, %cst_16 [0] : vector<32x256xf32> to vector<256xf32>
    %33 = vector.shape_cast %32 : vector<256xf32> to vector<1x256xf32>
    %34 = arith.addf %24, %33 : vector<1x256xf32>
    %c3_i32 = arith.constant 3 : i32
    %c32_i32_17 = arith.constant 32 : i32
    %35 = arith.muli %c3_i32, %c32_i32_17 : i32
    %36 = arith.index_cast %35 : i32 to index
    %c0_18 = arith.constant 0 : index
    %37 = vector.load %arg6[%36, %c0_18] : memref<128x256xf32, #tpu.memory_space<vmem>>, vector<32x256xf32>
    %cst_19 = arith.constant dense<0.000000e+00> : vector<256xf32>
    %38 = vector.multi_reduction <add>, %37, %cst_19 [0] : vector<32x256xf32> to vector<256xf32>
    %39 = vector.shape_cast %38 : vector<256xf32> to vector<1x256xf32>
    %40 = arith.addf %30, %39 : vector<1x256xf32>
    %41 = arith.mulf %37, %37 : vector<32x256xf32>
    %cst_20 = arith.constant dense<0.000000e+00> : vector<256xf32>
    %42 = vector.multi_reduction <add>, %41, %cst_20 [0] : vector<32x256xf32> to vector<256xf32>
    %43 = vector.shape_cast %42 : vector<256xf32> to vector<1x256xf32>
    %44 = arith.addf %34, %43 : vector<1x256xf32>
    %c4_i32 = arith.constant 4 : i32
    %cst_21 = arith.constant 7.812500e-03 : f32
    %45 = vector.broadcast %cst_21 : f32 to vector<1x256xf32>
    %46 = arith.mulf %40, %45 : vector<1x256xf32>
    %cst_22 = arith.constant 7.812500e-03 : f32
    %47 = vector.broadcast %cst_22 : f32 to vector<1x256xf32>
    %48 = arith.mulf %44, %47 : vector<1x256xf32>
    %49 = arith.mulf %46, %46 : vector<1x256xf32>
    %50 = arith.subf %48, %49 : vector<1x256xf32>
    %c0_23 = arith.constant 0 : index
    %c0_24 = arith.constant 0 : index
    %51 = vector.load %arg3[%c0_23, %c0_24] : memref<1x256xf32, #tpu.memory_space<vmem>>, vector<1x256xf32>
    %cst_25 = arith.constant 9.99999974E-6 : f32
    %52 = vector.broadcast %cst_25 : f32 to vector<1x256xf32>
    %53 = arith.addf %50, %52 : vector<1x256xf32>
    %54 = math.rsqrt %53 : vector<1x256xf32>
    %55 = arith.mulf %51, %54 : vector<1x256xf32>
    %c0_26 = arith.constant 0 : index
    %c0_27 = arith.constant 0 : index
    %56 = vector.load %arg4[%c0_26, %c0_27] : memref<1x256xf32, #tpu.memory_space<vmem>>, vector<1x256xf32>
    %57 = arith.mulf %46, %55 : vector<1x256xf32>
    %58 = arith.subf %56, %57 : vector<1x256xf32>
    %c0_28 = arith.constant 0 : index
    %c0_29 = arith.constant 0 : index
    %59 = vector.load %arg6[%c0_28, %c0_29] : memref<128x256xf32, #tpu.memory_space<vmem>>, vector<128x256xf32>
    %60 = vector.broadcast %55 : vector<1x256xf32> to vector<128x256xf32>
    %61 = arith.mulf %59, %60 : vector<128x256xf32>
    %62 = vector.broadcast %58 : vector<1x256xf32> to vector<128x256xf32>
    %63 = arith.addf %61, %62 : vector<128x256xf32>
    %cst_30 = arith.constant 0.000000e+00 : f32
    %64 = vector.broadcast %cst_30 : f32 to vector<128x256xf32>
    %65 = arith.maximumf %63, %64 : vector<128x256xf32>
    %c0_31 = arith.constant 0 : index
    %c0_32 = arith.constant 0 : index
    %66 = vector.load %arg5[%c0_31, %c0_32] : memref<128x256xf32, #tpu.memory_space<vmem>>, vector<128x256xf32>
    tpu.vector_store %arg5[%c0_31, %c0_32], %65 {strides = array<i32>} : memref<128x256xf32, #tpu.memory_space<vmem>>, vector<128x256xf32>,
    return
  }
  func.func @transform_0(%arg0: i32) -> (i32, i32) {
    %c0_i32 = arith.constant 0 : i32
    %c0_i32_0 = arith.constant 0 : i32
    %c0_i32_1 = arith.constant 0 : i32
    return %c0_i32, %c0_i32_0 : i32, i32
  }
  func.func @transform_1(%arg0: i32) -> (i32, i32) {
    %c0_i32 = arith.constant 0 : i32
    %c0_i32_0 = arith.constant 0 : i32
    %c0_i32_1 = arith.constant 0 : i32
    return %c0_i32, %c0_i32_0 : i32, i32
  }
  func.func @transform_2(%arg0: i32) -> (i32, i32) {
    %c0_i32 = arith.constant 0 : i32
    %c0_i32_0 = arith.constant 0 : i32
    %c0_i32_1 = arith.constant 0 : i32
    return %c0_i32, %c0_i32_0 : i32, i32
  }
  func.func @transform_3(%arg0: i32) -> (i32, i32) {
    %c0_i32 = arith.constant 0 : i32
    %c0_i32_0 = arith.constant 0 : i32
    %c0_i32_1 = arith.constant 0 : i32
    return %c0_i32, %c0_i32_0 : i32, i32
  }
  func.func @transform_4(%arg0: i32) -> (i32, i32) {
    %c0_i32 = arith.constant 0 : i32
    %c0_i32_0 = arith.constant 0 : i32
    %c0_i32_1 = arith.constant 0 : i32
    return %c0_i32, %c0_i32_0 : i32, i32
  }
}

</mosaic_0001>

<llo_original>
// kernel: tpu_custom_call.1
$region0: #{tpu_custom_call.1}
  #allocation0 [shape = 'u32[]', space=smem, size = 0x4, offset = 0x4, fixed_abs, tag = 'smem constant byte address 0x4 - core index']
  #allocation1 [shape = 'u32[144,128]{1,0:T(1,128)}', space=vmem, size = 0x12000, scoped, tag = 'internal scratch']
  #allocation2 [shape = 'f32[128,256]{1,0:T(8,128)}', space=vmem, size = 0x20000, scoped, tag = 'scratch operand']
  %s0 = inlined_call_operand.hbm [shape: bf16[128,1152], index: 0, kind: input, shape index: {}]
  %s1 = inlined_call_operand.hbm [shape: bf16[1152,256], index: 1, kind: input, shape index: {}]
  %s2 = inlined_call_operand.vmem [shape: f32[1,256], index: 2, kind: input, shape index: {}]
  %s3 = inlined_call_operand.vmem [shape: f32[1,256], index: 3, kind: input, shape index: {}]
  %s4 = inlined_call_operand.hbm [shape: f32[128,256], index: 4, kind: output, shape index: {}]
  %s5 = sld [smem:[#allocation0]]
  $region34: #{tpu_custom_call.1} parent=0
    _
  %s7 = ssub.s32 1, %s5
  %s8 = scalar_select 0, %s7, %s5
  $region1: #{tpu_custom_call.1} parent=0
    #allocation3 [shape = 'u8[294912]{0}', space=vmem, size = 0x48000, scoped, tag = 'input window, operand 0, single buffered']
    #allocation4 [shape = 's32[1]{0}', space=sflag, size = 0x4, scoped, tag = 'scoped memory for tpu_custom_call.1']
    #allocation5 [shape = 's32[1]{0}', space=sflag, size = 0x4, scoped, tag = 'scoped memory for tpu_custom_call.1']
    #allocation6 [shape = 'u8[589824]{0}', space=vmem, size = 0x90000, scoped, tag = 'input window, operand 1, single buffered']
    #allocation7 [shape = 's32[1]{0}', space=sflag, size = 0x4, scoped, tag = 'scoped memory for tpu_custom_call.1']
    #allocation8 [shape = 'u8[131072]{0}', space=vmem, size = 0x20000, scoped, tag = 'output window, operand 0, single buffered']
    %9 = vsyncpa [#allocation4], 0
    %10 = vsyncpa [#allocation7], 0
    %11 = vsyncpa [#allocation5], 0
    // Predicated region
    $region2: #{tpu_custom_call.1} parent=1 // pred_check
      _
    $region3: #{tpu_custom_call.1} parent=1 // pred_check_branch
      %13 = sbr.rel (0) target = $region5
    $region4: #{tpu_custom_call.1} parent=1 // pred_region
      %s15 = ssub.s32 9216, 9216
      %16 = vsyncadd [#allocation4], %s15
      %s17 = sshll.u32 [#allocation3], 4
      %s18 = int_to_ptr.vmem [resolvable:$true] %s17
      %23 = dma.hbm_to_vmem [thread:$0]  %s0, 9216, %s18, [#allocation4], 576, 576, 36
    $region5: #{tpu_custom_call.1} parent=1 // pred_fallthru
      _
    // Predicated region
    $region6: #{tpu_custom_call.1} parent=1 // pred_check
      _
    $region7: #{tpu_custom_call.1} parent=1 // pred_check_branch
      %25 = sbr.rel (0) target = $region9
    $region8: #{tpu_custom_call.1} parent=1 // pred_region
      %s27 = ssub.s32 18432, 18432
      %28 = vsyncadd [#allocation7], %s27
      %s29 = sshll.u32 [#allocation6], 4
      %s30 = int_to_ptr.vmem [resolvable:$true] %s29
      %35 = dma.hbm_to_vmem [thread:$0]  %s1, 18432, %s30, [#allocation7], 128, 128, 8
    $region9: #{tpu_custom_call.1} parent=1 // pred_fallthru
      _
    // Predicated region
    $region10: #{tpu_custom_call.1} parent=1 // pred_check
      _
    $region11: #{tpu_custom_call.1} parent=1 // pred_check_branch
      %37 = sbr.rel (0) target = $region13
    $region12: #{tpu_custom_call.1} parent=1 // pred_region
      _
    $region13: #{tpu_custom_call.1} parent=1 // pred_fallthru
      _
    // Predicated region
    $region14: #{tpu_custom_call.1} parent=1 // pred_check
      _
    $region15: #{tpu_custom_call.1} parent=1 // pred_check_branch
      %39 = sbr.rel (0) target = $region17
    $region16: #{tpu_custom_call.1} parent=1 // pred_region
      _
    $region17: #{tpu_custom_call.1} parent=1 // pred_fallthru
      _
    // Predicated region
    $region18: #{tpu_custom_call.1} parent=1 // pred_check
      _
    $region19: #{tpu_custom_call.1} parent=1 // pred_check_branch
      %41 = sbr.rel (0) target = $region21
    $region20: #{tpu_custom_call.1} parent=1 // pred_region
      %42 = dma.done [#allocation4], 9216
    $region21: #{tpu_custom_call.1} parent=1 // pred_fallthru
      _
    // Predicated region
    $region22: #{tpu_custom_call.1} parent=1 // pred_check
      _
    $region23: #{tpu_custom_call.1} parent=1 // pred_check_branch
      %44 = sbr.rel (0) target = $region25
    $region24: #{tpu_custom_call.1} parent=1 // pred_region
      %45 = dma.done [#allocation7], 18432
    $region25: #{tpu_custom_call.1} parent=1 // pred_fallthru
      _
    %v47 = vld [vmem:[#allocation3] sm:$0xff]
    %v48 = vld [vmem:[#allocation3 + $0x8] sm:$0xff]
    %v49 = vld [vmem:[#allocation3 + $0x10] sm:$0xff]
    %v50 = vld [vmem:[#allocation3 + $0x18] sm:$0xff]
    %v51 = vld [vmem:[#allocation3 + $0x20] sm:$0xf]
    %v52 = vld [vmem:[#allocation3 + $0x24] sm:$0xff]
    %v53 = vld [vmem:[#allocation3 + $0x2c] sm:$0xff]
    %v54 = vld [vmem:[#allocation3 + $0x34] sm:$0xff]
    %v55 = vld [vmem:[#allocation3 + $0x3c] sm:$0xff]
    %v56 = vld [vmem:[#allocation3 + $0x44] sm:$0xf]
    %v57 = vld [vmem:[#allocation3 + $0x48] sm:$0xff]
    %v58 = vld [vmem:[#allocation3 + $0x50] sm:$0xff]
    %v59 = vld [vmem:[#allocation3 + $0x58] sm:$0xff]
    %v60 = vld [vmem:[#allocation3 + $0x60] sm:$0xff]
    %v61 = vld [vmem:[#allocation3 + $0x68] sm:$0xf]
    %v62 = vld [vmem:[#allocation3 + $0x6c] sm:$0xff]
    %v63 = vld [vmem:[#allocation3 + $0x74] sm:$0xff]
    %v64 = vld [vmem:[#allocation3 + $0x7c] sm:$0xff]
    %v65 = vld [vmem:[#allocation3 + $0x84] sm:$0xff]
    %v66 = vld [vmem:[#allocation3 + $0x8c] sm:$0xf]
    %v67 = vld [vmem:[#allocation3 + $0x90] sm:$0xff]
    %v68 = vld [vmem:[#allocation3 + $0x98] sm:$0xff]
    %v69 = vld [vmem:[#allocation3 + $0xa0] sm:$0xff]
    %v70 = vld [vmem:[#allocation3 + $0xa8] sm:$0xff]
    %v71 = vld [vmem:[#allocation3 + $0xb0] sm:$0xf]
    %v72 = vld [vmem:[#allocation3 + $0xb4] sm:$0xff]
    %v73 = vld [vmem:[#allocation3 + $0xbc] sm:$0xff]
    %v74 = vld [vmem:[#allocation3 + $0xc4] sm:$0xff]
    %v75 = vld [vmem:[#allocation3 + $0xcc] sm:$0xff]
    %v76 = vld [vmem:[#allocation3 + $0xd4] sm:$0xf]
    %v77 = vld [vmem:[#allocation3 + $0xd8] sm:$0xff]
    %v78 = vld [vmem:[#allocation3 + $0xe0] sm:$0xff]
    %v79 = vld [vmem:[#allocation3 + $0xe8] sm:$0xff]
    %v80 = vld [vmem:[#allocation3 + $0xf0] sm:$0xff]
    %v81 = vld [vmem:[#allocation3 + $0xf8] sm:$0xf]
    %v82 = vld [vmem:[#allocation3 + $0xfc] sm:$0xff]
    %v83 = vld [vmem:[#allocation3 + $0x104] sm:$0xff]
    %v84 = vld [vmem:[#allocation3 + $0x10c] sm:$0xff]
    %v85 = vld [vmem:[#allocation3 + $0x114] sm:$0xff]
    %v86 = vld [vmem:[#allocation3 + $0x11c] sm:$0xf]
    %v87 = vld [vmem:[#allocation3 + $0x120] sm:$0xff]
    %v88 = vld [vmem:[#allocation3 + $0x128] sm:$0xff]
    %v89 = vld [vmem:[#allocation3 + $0x130] sm:$0xff]
    %v90 = vld [vmem:[#allocation3 + $0x138] sm:$0xff]
    %v91 = vld [vmem:[#allocation3 + $0x140] sm:$0xf]
    %v92 = vld [vmem:[#allocation3 + $0x144] sm:$0xff]
    %v93 = vld [vmem:[#allocation3 + $0x14c] sm:$0xff]
    %v94 = vld [vmem:[#allocation3 + $0x154] sm:$0xff]
    %v95 = vld [vmem:[#allocation3 + $0x15c] sm:$0xff]
    %v96 = vld [vmem:[#allocation3 + $0x164] sm:$0xf]
    %v97 = vld [vmem:[#allocation3 + $0x168] sm:$0xff]
    %v98 = vld [vmem:[#allocation3 + $0x170] sm:$0xff]
    %v99 = vld [vmem:[#allocation3 + $0x178] sm:$0xff]
    %v100 = vld [vmem:[#allocation3 + $0x180] sm:$0xff]
    %v101 = vld [vmem:[#allocation3 + $0x188] sm:$0xf]
    %v102 = vld [vmem:[#allocation3 + $0x18c] sm:$0xff]
    %v103 = vld [vmem:[#allocation3 + $0x194] sm:$0xff]
    %v104 = vld [vmem:[#allocation3 + $0x19c] sm:$0xff]
    %v105 = vld [vmem:[#allocation3 + $0x1a4] sm:$0xff]
    %v106 = vld [vmem:[#allocation3 + $0x1ac] sm:$0xf]
    %v107 = vld [vmem:[#allocation3 + $0x1b0] sm:$0xff]
    %v108 = vld [vmem:[#allocation3 + $0x1b8] sm:$0xff]
    %v109 = vld [vmem:[#allocation3 + $0x1c0] sm:$0xff]
    %v110 = vld [vmem:[#allocation3 + $0x1c8] sm:$0xff]
    %v111 = vld [vmem:[#allocation3 + $0x1d0] sm:$0xf]
    %v112 = vld [vmem:[#allocation3 + $0x1d4] sm:$0xff]
    %v113 = vld [vmem:[#allocation3 + $0x1dc] sm:$0xff]
    %v114 = vld [vmem:[#allocation3 + $0x1e4] sm:$0xff]
    %v115 = vld [vmem:[#allocation3 + $0x1ec] sm:$0xff]
    %v116 = vld [vmem:[#allocation3 + $0x1f4] sm:$0xf]
    %v117 = vld [vmem:[#allocation3 + $0x1f8] sm:$0xff]
    %v118 = vld [vmem:[#allocation3 + $0x200] sm:$0xff]
    %v119 = vld [vmem:[#allocation3 + $0x208] sm:$0xff]
    %v120 = vld [vmem:[#allocation3 + $0x210] sm:$0xff]
    %v121 = vld [vmem:[#allocation3 + $0x218] sm:$0xf]
    %v122 = vld [vmem:[#allocation3 + $0x21c] sm:$0xff]
    %v123 = vld [vmem:[#allocation3 + $0x224] sm:$0xff]
    %v124 = vld [vmem:[#allocation3 + $0x22c] sm:$0xff]
    %v125 = vld [vmem:[#allocation3 + $0x234] sm:$0xff]
    %v126 = vld [vmem:[#allocation3 + $0x23c] sm:$0xf]
    %v127 = vld [vmem:[#allocation6] sm:$0xff]
    %v128 = vld [vmem:[#allocation6 + $0x8] sm:$0xff]
    %v129 = vld [vmem:[#allocation6 + $0x10] sm:$0xff]
    %v130 = vld [vmem:[#allocation6 + $0x18] sm:$0xff]
    %v131 = vld [vmem:[#allocation6 + $0x20] sm:$0xff]
    %v132 = vld [vmem:[#allocation6 + $0x28] sm:$0xff]
    %v133 = vld [vmem:[#allocation6 + $0x30] sm:$0xff]
    %v134 = vld [vmem:[#allocation6 + $0x38] sm:$0xff]
    %v135 = vld [vmem:[#allocation6 + $0x40] sm:$0xff]
    %v136 = vld [vmem:[#allocation6 + $0x48] sm:$0xff]
    %v137 = vld [vmem:[#allocation6 + $0x50] sm:$0xff]
    %v138 = vld [vmem:[#allocation6 + $0x58] sm:$0xff]
    %v139 = vld [vmem:[#allocation6 + $0x60] sm:$0xff]
    %v140 = vld [vmem:[#allocation6 + $0x68] sm:$0xff]
    %v141 = vld [vmem:[#allocation6 + $0x70] sm:$0xff]
    %v142 = vld [vmem:[#allocation6 + $0x78] sm:$0xff]
    %v143 = vld [vmem:[#allocation6 + $0x80] sm:$0xff]
    %v144 = vld [vmem:[#allocation6 + $0x88] sm:$0xff]
    %v145 = vld [vmem:[#allocation6 + $0x90] sm:$0xff]
    %v146 = vld [vmem:[#allocation6 + $0x98] sm:$0xff]
    %v147 = vld [vmem:[#allocation6 + $0xa0] sm:$0xff]
    %v148 = vld [vmem:[#allocation6 + $0xa8] sm:$0xff]
    %v149 = vld [vmem:[#allocation6 + $0xb0] sm:$0xff]
    %v150 = vld [vmem:[#allocation6 + $0xb8] sm:$0xff]
    %v151 = vld [vmem:[#allocation6 + $0xc0] sm:$0xff]
    %v152 = vld [vmem:[#allocation6 + $0xc8] sm:$0xff]
    %v153 = vld [vmem:[#allocation6 + $0xd0] sm:$0xff]
    %v154 = vld [vmem:[#allocation6 + $0xd8] sm:$0xff]
    %v155 = vld [vmem:[#allocation6 + $0xe0] sm:$0xff]
    %v156 = vld [vmem:[#allocation6 + $0xe8] sm:$0xff]
    %v157 = vld [vmem:[#allocation6 + $0xf0] sm:$0xff]
    %v158 = vld [vmem:[#allocation6 + $0xf8] sm:$0xff]
    %v159 = vld [vmem:[#allocation6 + $0x100] sm:$0xff]
    %v160 = vld [vmem:[#allocation6 + $0x108] sm:$0xff]
    %v161 = vld [vmem:[#allocation6 + $0x110] sm:$0xff]
    %v162 = vld [vmem:[#allocation6 + $0x118] sm:$0xff]
    %v163 = vld [vmem:[#allocation6 + $0x120] sm:$0xff]
    %v164 = vld [vmem:[#allocation6 + $0x128] sm:$0xff]
    %v165 = vld [vmem:[#allocation6 + $0x130] sm:$0xff]
    %v166 = vld [vmem:[#allocation6 + $0x138] sm:$0xff]
    %v167 = vld [vmem:[#allocation6 + $0x140] sm:$0xff]
    %v168 = vld [vmem:[#allocation6 + $0x148] sm:$0xff]
    %v169 = vld [vmem:[#allocation6 + $0x150] sm:$0xff]
    %v170 = vld [vmem:[#allocation6 + $0x158] sm:$0xff]
    %v171 = vld [vmem:[#allocation6 + $0x160] sm:$0xff]
    %v172 = vld [vmem:[#allocation6 + $0x168] sm:$0xff]
    %v173 = vld [vmem:[#allocation6 + $0x170] sm:$0xff]
    %v174 = vld [vmem:[#allocation6 + $0x178] sm:$0xff]
    %v175 = vld [vmem:[#allocation6 + $0x180] sm:$0xff]
    %v176 = vld [vmem:[#allocation6 + $0x188] sm:$0xff]
    %v177 = vld [vmem:[#allocation6 + $0x190] sm:$0xff]
    %v178 = vld [vmem:[#allocation6 + $0x198] sm:$0xff]
    %v179 = vld [vmem:[#allocation6 + $0x1a0] sm:$0xff]
    %v180 = vld [vmem:[#allocation6 + $0x1a8] sm:$0xff]
    %v181 = vld [vmem:[#allocation6 + $0x1b0] sm:$0xff]
    %v182 = vld [vmem:[#allocation6 + $0x1b8] sm:$0xff]
    %v183 = vld [vmem:[#allocation6 + $0x1c0] sm:$0xff]
    %v184 = vld [vmem:[#allocation6 + $0x1c8] sm:$0xff]
    %v185 = vld [vmem:[#allocation6 + $0x1d0] sm:$0xff]
    %v186 = vld [vmem:[#allocation6 + $0x1d8] sm:$0xff]
    %v187 = vld [vmem:[#allocation6 + $0x1e0] sm:$0xff]
    %v188 = vld [vmem:[#allocation6 + $0x1e8] sm:$0xff]
    %v189 = vld [vmem:[#allocation6 + $0x1f0] sm:$0xff]
    %v190 = vld [vmem:[#allocation6 + $0x1f8] sm:$0xff]
    %v191 = vld [vmem:[#allocation6 + $0x200] sm:$0xff]
    %v192 = vld [vmem:[#allocation6 + $0x208] sm:$0xff]
    %v193 = vld [vmem:[#allocation6 + $0x210] sm:$0xff]
    %v194 = vld [vmem:[#allocation6 + $0x218] sm:$0xff]
    %v195 = vld [vmem:[#allocation6 + $0x220] sm:$0xff]
    %v196 = vld [vmem:[#allocation6 + $0x228] sm:$0xff]
    %v197 = vld [vmem:[#allocation6 + $0x230] sm:$0xff]
    %v198 = vld [vmem:[#allocation6 + $0x238] sm:$0xff]
    %v199 = vld [vmem:[#allocation6 + $0x240] sm:$0xff]
    %v200 = vld [vmem:[#allocation6 + $0x248] sm:$0xff]
    %v201 = vld [vmem:[#allocation6 + $0x250] sm:$0xff]
    %v202 = vld [vmem:[#allocation6 + $0x258] sm:$0xff]
    %v203 = vld [vmem:[#allocation6 + $0x260] sm:$0xff]
    %v204 = vld [vmem:[#allocation6 + $0x268] sm:$0xff]
    %v205 = vld [vmem:[#allocation6 + $0x270] sm:$0xff]
    %v206 = vld [vmem:[#allocation6 + $0x278] sm:$0xff]
    %v207 = vld [vmem:[#allocation6 + $0x280] sm:$0xff]
    %v208 = vld [vmem:[#allocation6 + $0x288] sm:$0xff]
    %v209 = vld [vmem:[#allocation6 + $0x290] sm:$0xff]
    %v210 = vld [vmem:[#allocation6 + $0x298] sm:$0xff]
    %v211 = vld [vmem:[#allocation6 + $0x2a0] sm:$0xff]
    %v212 = vld [vmem:[#allocation6 + $0x2a8] sm:$0xff]
    %v213 = vld [vmem:[#allocation6 + $0x2b0] sm:$0xff]
    %v214 = vld [vmem:[#allocation6 + $0x2b8] sm:$0xff]
    %v215 = vld [vmem:[#allocation6 + $0x2c0] sm:$0xff]
    %v216 = vld [vmem:[#allocation6 + $0x2c8] sm:$0xff]
    %v217 = vld [vmem:[#allocation6 + $0x2d0] sm:$0xff]
    %v218 = vld [vmem:[#allocation6 + $0x2d8] sm:$0xff]
    %v219 = vld [vmem:[#allocation6 + $0x2e0] sm:$0xff]
    %v220 = vld [vmem:[#allocation6 + $0x2e8] sm:$0xff]
    %v221 = vld [vmem:[#allocation6 + $0x2f0] sm:$0xff]
    %v222 = vld [vmem:[#allocation6 + $0x2f8] sm:$0xff]
    %v223 = vld [vmem:[#allocation6 + $0x300] sm:$0xff]
    %v224 = vld [vmem:[#allocation6 + $0x308] sm:$0xff]
    %v225 = vld [vmem:[#allocation6 + $0x310] sm:$0xff]
    %v226 = vld [vmem:[#allocation6 + $0x318] sm:$0xff]
    %v227 = vld [vmem:[#allocation6 + $0x320] sm:$0xff]
    %v228 = vld [vmem:[#allocation6 + $0x328] sm:$0xff]
    %v229 = vld [vmem:[#allocation6 + $0x330] sm:$0xff]
    %v230 = vld [vmem:[#allocation6 + $0x338] sm:$0xff]
    %v231 = vld [vmem:[#allocation6 + $0x340] sm:$0xff]
    %v232 = vld [vmem:[#allocation6 + $0x348] sm:$0xff]
    %v233 = vld [vmem:[#allocation6 + $0x350] sm:$0xff]
    %v234 = vld [vmem:[#allocation6 + $0x358] sm:$0xff]
    %v235 = vld [vmem:[#allocation6 + $0x360] sm:$0xff]
    %v236 = vld [vmem:[#allocation6 + $0x368] sm:$0xff]
    %v237 = vld [vmem:[#allocation6 + $0x370] sm:$0xff]
    %v238 = vld [vmem:[#allocation6 + $0x378] sm:$0xff]
    %v239 = vld [vmem:[#allocation6 + $0x380] sm:$0xff]
    %v240 = vld [vmem:[#allocation6 + $0x388] sm:$0xff]
    %v241 = vld [vmem:[#allocation6 + $0x390] sm:$0xff]
    %v242 = vld [vmem:[#allocation6 + $0x398] sm:$0xff]
    %v243 = vld [vmem:[#allocation6 + $0x3a0] sm:$0xff]
    %v244 = vld [vmem:[#allocation6 + $0x3a8] sm:$0xff]
    %v245 = vld [vmem:[#allocation6 + $0x3b0] sm:$0xff]
    %v246 = vld [vmem:[#allocation6 + $0x3b8] sm:$0xff]
    %v247 = vld [vmem:[#allocation6 + $0x3c0] sm:$0xff]
    %v248 = vld [vmem:[#allocation6 + $0x3c8] sm:$0xff]
    %v249 = vld [vmem:[#allocation6 + $0x3d0] sm:$0xff]
    %v250 = vld [vmem:[#allocation6 + $0x3d8] sm:$0xff]
    %v251 = vld [vmem:[#allocation6 + $0x3e0] sm:$0xff]
    %v252 = vld [vmem:[#allocation6 + $0x3e8] sm:$0xff]
    %v253 = vld [vmem:[#allocation6 + $0x3f0] sm:$0xff]
    %v254 = vld [vmem:[#allocation6 + $0x3f8] sm:$0xff]
    %v255 = vld [vmem:[#allocation6 + $0x400] sm:$0xff]
    %v256 = vld [vmem:[#allocation6 + $0x408] sm:$0xff]
    %v257 = vld [vmem:[#allocation6 + $0x410] sm:$0xff]
    %v258 = vld [vmem:[#allocation6 + $0x418] sm:$0xff]
    %v259 = vld [vmem:[#allocation6 + $0x420] sm:$0xff]
    %v260 = vld [vmem:[#allocation6 + $0x428] sm:$0xff]
    %v261 = vld [vmem:[#allocation6 + $0x430] sm:$0xff]
    %v262 = vld [vmem:[#allocation6 + $0x438] sm:$0xff]
    %v263 = vld [vmem:[#allocation6 + $0x440] sm:$0xff]
    %v264 = vld [vmem:[#allocation6 + $0x448] sm:$0xff]
    %v265 = vld [vmem:[#allocation6 + $0x450] sm:$0xff]
    %v266 = vld [vmem:[#allocation6 + $0x458] sm:$0xff]
    %v267 = vld [vmem:[#allocation6 + $0x460] sm:$0xff]
    %v268 = vld [vmem:[#allocation6 + $0x468] sm:$0xff]
    %v269 = vld [vmem:[#allocation6 + $0x470] sm:$0xff]
    %v270 = vld [vmem:[#allocation6 + $0x478] sm:$0xff]
    %v351 = vunpack.c.l.b16 %v47
    %v352 = vunpack.c.h.b16 %v47
    %v353 = vunpack.c.l.b16 %v48
    %v354 = vunpack.c.h.b16 %v48
    %v355 = vunpack.c.l.b16 %v49
    %v356 = vunpack.c.h.b16 %v49
    %v357 = vunpack.c.l.b16 %v50
    %v358 = vunpack.c.h.b16 %v50
    %v359 = vunpack.c.l.b16 %v51
    %v360 = vunpack.c.l.b16 %v52
    %v361 = vunpack.c.h.b16 %v52
    %v362 = vunpack.c.l.b16 %v53
    %v363 = vunpack.c.h.b16 %v53
    %v364 = vunpack.c.l.b16 %v54
    %v365 = vunpack.c.h.b16 %v54
    %v366 = vunpack.c.l.b16 %v55
    %v367 = vunpack.c.h.b16 %v55
    %v368 = vunpack.c.l.b16 %v56
    %v369 = vunpack.c.l.b16 %v57
    %v370 = vunpack.c.h.b16 %v57
    %v371 = vunpack.c.l.b16 %v58
    %v372 = vunpack.c.h.b16 %v58
    %v373 = vunpack.c.l.b16 %v59
    %v374 = vunpack.c.h.b16 %v59
    %v375 = vunpack.c.l.b16 %v60
    %v376 = vunpack.c.h.b16 %v60
    %v377 = vunpack.c.l.b16 %v61
    %v378 = vunpack.c.l.b16 %v62
    %v379 = vunpack.c.h.b16 %v62
    %v380 = vunpack.c.l.b16 %v63
    %v381 = vunpack.c.h.b16 %v63
    %v382 = vunpack.c.l.b16 %v64
    %v383 = vunpack.c.h.b16 %v64
    %v384 = vunpack.c.l.b16 %v65
    %v385 = vunpack.c.h.b16 %v65
    %v386 = vunpack.c.l.b16 %v66
    %v387 = vunpack.c.l.b16 %v67
    %v388 = vunpack.c.h.b16 %v67
    %v389 = vunpack.c.l.b16 %v68
    %v390 = vunpack.c.h.b16 %v68
    %v391 = vunpack.c.l.b16 %v69
    %v392 = vunpack.c.h.b16 %v69
    %v393 = vunpack.c.l.b16 %v70
    %v394 = vunpack.c.h.b16 %v70
    %v395 = vunpack.c.l.b16 %v71
    %v396 = vunpack.c.l.b16 %v72
    %v397 = vunpack.c.h.b16 %v72
    %v398 = vunpack.c.l.b16 %v73
    %v399 = vunpack.c.h.b16 %v73
    %v400 = vunpack.c.l.b16 %v74
    %v401 = vunpack.c.h.b16 %v74
    %v402 = vunpack.c.l.b16 %v75
    %v403 = vunpack.c.h.b16 %v75
    %v404 = vunpack.c.l.b16 %v76
    %v405 = vunpack.c.l.b16 %v77
    %v406 = vunpack.c.h.b16 %v77
    %v407 = vunpack.c.l.b16 %v78
    %v408 = vunpack.c.h.b16 %v78
    %v409 = vunpack.c.l.b16 %v79
    %v410 = vunpack.c.h.b16 %v79
    %v411 = vunpack.c.l.b16 %v80
    %v412 = vunpack.c.h.b16 %v80
    %v413 = vunpack.c.l.b16 %v81
    %v414 = vunpack.c.l.b16 %v82
    %v415 = vunpack.c.h.b16 %v82
    %v416 = vunpack.c.l.b16 %v83
    %v417 = vunpack.c.h.b16 %v83
    %v418 = vunpack.c.l.b16 %v84
    %v419 = vunpack.c.h.b16 %v84
    %v420 = vunpack.c.l.b16 %v85
    %v421 = vunpack.c.h.b16 %v85
    %v422 = vunpack.c.l.b16 %v86
    %v423 = vunpack.c.l.b16 %v87
    %v424 = vunpack.c.h.b16 %v87
    %v425 = vunpack.c.l.b16 %v88
    %v426 = vunpack.c.h.b16 %v88
    %v427 = vunpack.c.l.b16 %v89
    %v428 = vunpack.c.h.b16 %v89
    %v429 = vunpack.c.l.b16 %v90
    %v430 = vunpack.c.h.b16 %v90
    %v431 = vunpack.c.l.b16 %v91
    %v432 = vunpack.c.l.b16 %v92
    %v433 = vunpack.c.h.b16 %v92
    %v434 = vunpack.c.l.b16 %v93
    %v435 = vunpack.c.h.b16 %v93
    %v436 = vunpack.c.l.b16 %v94
    %v437 = vunpack.c.h.b16 %v94
    %v438 = vunpack.c.l.b16 %v95
    %v439 = vunpack.c.h.b16 %v95
    %v440 = vunpack.c.l.b16 %v96
    %v441 = vunpack.c.l.b16 %v97
    %v442 = vunpack.c.h.b16 %v97
    %v443 = vunpack.c.l.b16 %v98
    %v444 = vunpack.c.h.b16 %v98
    %v445 = vunpack.c.l.b16 %v99
    %v446 = vunpack.c.h.b16 %v99
    %v447 = vunpack.c.l.b16 %v100
    %v448 = vunpack.c.h.b16 %v100
    %v449 = vunpack.c.l.b16 %v101
    %v450 = vunpack.c.l.b16 %v102
    %v451 = vunpack.c.h.b16 %v102
    %v452 = vunpack.c.l.b16 %v103
    %v453 = vunpack.c.h.b16 %v103
    %v454 = vunpack.c.l.b16 %v104
    %v455 = vunpack.c.h.b16 %v104
    %v456 = vunpack.c.l.b16 %v105
    %v457 = vunpack.c.h.b16 %v105
    %v458 = vunpack.c.l.b16 %v106
    %v459 = vunpack.c.l.b16 %v107
    %v460 = vunpack.c.h.b16 %v107
    %v461 = vunpack.c.l.b16 %v108
    %v462 = vunpack.c.h.b16 %v108
    %v463 = vunpack.c.l.b16 %v109
    %v464 = vunpack.c.h.b16 %v109
    %v465 = vunpack.c.l.b16 %v110
    %v466 = vunpack.c.h.b16 %v110
    %v467 = vunpack.c.l.b16 %v111
    %v468 = vunpack.c.l.b16 %v112
    %v469 = vunpack.c.h.b16 %v112
    %v470 = vunpack.c.l.b16 %v113
    %v471 = vunpack.c.h.b16 %v113
    %v472 = vunpack.c.l.b16 %v114
    %v473 = vunpack.c.h.b16 %v114
    %v474 = vunpack.c.l.b16 %v115
    %v475 = vunpack.c.h.b16 %v115
    %v476 = vunpack.c.l.b16 %v116
    %v477 = vunpack.c.l.b16 %v117
    %v478 = vunpack.c.h.b16 %v117
    %v479 = vunpack.c.l.b16 %v118
    %v480 = vunpack.c.h.b16 %v118
    %v481 = vunpack.c.l.b16 %v119
    %v482 = vunpack.c.h.b16 %v119
    %v483 = vunpack.c.l.b16 %v120
    %v484 = vunpack.c.h.b16 %v120
    %v485 = vunpack.c.l.b16 %v121
    %v486 = vunpack.c.l.b16 %v122
    %v487 = vunpack.c.h.b16 %v122
    %v488 = vunpack.c.l.b16 %v123
    %v489 = vunpack.c.h.b16 %v123
    %v490 = vunpack.c.l.b16 %v124
    %v491 = vunpack.c.h.b16 %v124
    %v492 = vunpack.c.l.b16 %v125
    %v493 = vunpack.c.h.b16 %v125
    %v494 = vunpack.c.l.b16 %v126
    %v495 = vpack.c.b16 %v360, %v351
    %v496 = vpack.c.b16 %v361, %v352
    %v497 = vpack.c.b16 %v362, %v353
    %v498 = vpack.c.b16 %v363, %v354
    %v499 = vpack.c.b16 %v364, %v355
    %v500 = vpack.c.b16 %v365, %v356
    %v501 = vpack.c.b16 %v366, %v357
    %v502 = vpack.c.b16 %v367, %v358
    %v503 = vpack.c.b16 %v368, %v359
    %v504 = vpack.c.b16 %v378, %v369
    %v505 = vpack.c.b16 %v379, %v370
    %v506 = vpack.c.b16 %v380, %v371
    %v507 = vpack.c.b16 %v381, %v372
    %v508 = vpack.c.b16 %v382, %v373
    %v509 = vpack.c.b16 %v383, %v374
    %v510 = vpack.c.b16 %v384, %v375
    %v511 = vpack.c.b16 %v385, %v376
    %v512 = vpack.c.b16 %v386, %v377
    %v513 = vpack.c.b16 %v396, %v387
    %v514 = vpack.c.b16 %v397, %v388
    %v515 = vpack.c.b16 %v398, %v389
    %v516 = vpack.c.b16 %v399, %v390
    %v517 = vpack.c.b16 %v400, %v391
    %v518 = vpack.c.b16 %v401, %v392
    %v519 = vpack.c.b16 %v402, %v393
    %v520 = vpack.c.b16 %v403, %v394
    %v521 = vpack.c.b16 %v404, %v395
    %v522 = vpack.c.b16 %v414, %v405
    %v523 = vpack.c.b16 %v415, %v406
    %v524 = vpack.c.b16 %v416, %v407
    %v525 = vpack.c.b16 %v417, %v408
    %v526 = vpack.c.b16 %v418, %v409
    %v527 = vpack.c.b16 %v419, %v410
    %v528 = vpack.c.b16 %v420, %v411
    %v529 = vpack.c.b16 %v421, %v412
    %v530 = vpack.c.b16 %v422, %v413
    %v531 = vpack.c.b16 %v432, %v423
    %v532 = vpack.c.b16 %v433, %v424
    %v533 = vpack.c.b16 %v434, %v425
    %v534 = vpack.c.b16 %v435, %v426
    %v535 = vpack.c.b16 %v436, %v427
    %v536 = vpack.c.b16 %v437, %v428
    %v537 = vpack.c.b16 %v438, %v429
    %v538 = vpack.c.b16 %v439, %v430
    %v539 = vpack.c.b16 %v440, %v431
    %v540 = vpack.c.b16 %v450, %v441
    %v541 = vpack.c.b16 %v451, %v442
    %v542 = vpack.c.b16 %v452, %v443
    %v543 = vpack.c.b16 %v453, %v444
    %v544 = vpack.c.b16 %v454, %v445
    %v545 = vpack.c.b16 %v455, %v446
    %v546 = vpack.c.b16 %v456, %v447
    %v547 = vpack.c.b16 %v457, %v448
    %v548 = vpack.c.b16 %v458, %v449
    %v549 = vpack.c.b16 %v468, %v459
    %v550 = vpack.c.b16 %v469, %v460
    %v551 = vpack.c.b16 %v470, %v461
    %v552 = vpack.c.b16 %v471, %v462
    %v553 = vpack.c.b16 %v472, %v463
    %v554 = vpack.c.b16 %v473, %v464
    %v555 = vpack.c.b16 %v474, %v465
    %v556 = vpack.c.b16 %v475, %v466
    %v557 = vpack.c.b16 %v476, %v467
    %v558 = vpack.c.b16 %v486, %v477
    %v559 = vpack.c.b16 %v487, %v478
    %v560 = vpack.c.b16 %v488, %v479
    %v561 = vpack.c.b16 %v489, %v480
    %v562 = vpack.c.b16 %v490, %v481
    %v563 = vpack.c.b16 %v491, %v482
    %v564 = vpack.c.b16 %v492, %v483
    %v565 = vpack.c.b16 %v493, %v484
    %v566 = vpack.c.b16 %v494, %v485
    %v783 = vunpack.c.l.b16 %v127
    %v784 = vunpack.c.h.b16 %v127
    %v785 = vunpack.c.l.b16 %v128
    %v786 = vunpack.c.h.b16 %v128
    %v787 = vunpack.c.l.b16 %v129
    %v788 = vunpack.c.h.b16 %v129
    %v789 = vunpack.c.l.b16 %v130
    %v790 = vunpack.c.h.b16 %v130
    %v791 = vunpack.c.l.b16 %v131
    %v792 = vunpack.c.h.b16 %v131
    %v793 = vunpack.c.l.b16 %v132
    %v794 = vunpack.c.h.b16 %v132
    %v795 = vunpack.c.l.b16 %v133
    %v796 = vunpack.c.h.b16 %v133
    %v797 = vunpack.c.l.b16 %v134
    %v798 = vunpack.c.h.b16 %v134
    %v799 = vunpack.c.l.b16 %v135
    %v800 = vunpack.c.h.b16 %v135
    %v801 = vunpack.c.l.b16 %v136
    %v802 = vunpack.c.h.b16 %v136
    %v803 = vunpack.c.l.b16 %v137
    %v804 = vunpack.c.h.b16 %v137
    %v805 = vunpack.c.l.b16 %v138
    %v806 = vunpack.c.h.b16 %v138
    %v807 = vunpack.c.l.b16 %v139
    %v808 = vunpack.c.h.b16 %v139
    %v809 = vunpack.c.l.b16 %v140
    %v810 = vunpack.c.h.b16 %v140
    %v811 = vunpack.c.l.b16 %v141
    %v812 = vunpack.c.h.b16 %v141
    %v813 = vunpack.c.l.b16 %v142
    %v814 = vunpack.c.h.b16 %v142
    %v815 = vunpack.c.l.b16 %v143
    %v816 = vunpack.c.h.b16 %v143
    %v817 = vunpack.c.l.b16 %v144
    %v818 = vunpack.c.h.b16 %v144
    %v819 = vunpack.c.l.b16 %v145
    %v820 = vunpack.c.h.b16 %v145
    %v821 = vunpack.c.l.b16 %v146
    %v822 = vunpack.c.h.b16 %v146
    %v823 = vunpack.c.l.b16 %v147
    %v824 = vunpack.c.h.b16 %v147
    %v825 = vunpack.c.l.b16 %v148
    %v826 = vunpack.c.h.b16 %v148
    %v827 = vunpack.c.l.b16 %v149
    %v828 = vunpack.c.h.b16 %v149
    %v829 = vunpack.c.l.b16 %v150
    %v830 = vunpack.c.h.b16 %v150
    %v831 = vunpack.c.l.b16 %v151
    %v832 = vunpack.c.h.b16 %v151
    %v833 = vunpack.c.l.b16 %v152
    %v834 = vunpack.c.h.b16 %v152
    %v835 = vunpack.c.l.b16 %v153
    %v836 = vunpack.c.h.b16 %v153
    %v837 = vunpack.c.l.b16 %v154
    %v838 = vunpack.c.h.b16 %v154
    %v839 = vunpack.c.l.b16 %v155
    %v840 = vunpack.c.h.b16 %v155
    %v841 = vunpack.c.l.b16 %v156
    %v842 = vunpack.c.h.b16 %v156
    %v843 = vunpack.c.l.b16 %v157
    %v844 = vunpack.c.h.b16 %v157
    %v845 = vunpack.c.l.b16 %v158
    %v846 = vunpack.c.h.b16 %v158
    %v847 = vunpack.c.l.b16 %v159
    %v848 = vunpack.c.h.b16 %v159
    %v849 = vunpack.c.l.b16 %v160
    %v850 = vunpack.c.h.b16 %v160
    %v851 = vunpack.c.l.b16 %v161
    %v852 = vunpack.c.h.b16 %v161
    %v853 = vunpack.c.l.b16 %v162
    %v854 = vunpack.c.h.b16 %v162
    %v855 = vunpack.c.l.b16 %v163
    %v856 = vunpack.c.h.b16 %v163
    %v857 = vunpack.c.l.b16 %v164
    %v858 = vunpack.c.h.b16 %v164
    %v859 = vunpack.c.l.b16 %v165
    %v860 = vunpack.c.h.b16 %v165
    %v861 = vunpack.c.l.b16 %v166
    %v862 = vunpack.c.h.b16 %v166
    %v863 = vunpack.c.l.b16 %v167
    %v864 = vunpack.c.h.b16 %v167
    %v865 = vunpack.c.l.b16 %v168
    %v866 = vunpack.c.h.b16 %v168
    %v867 = vunpack.c.l.b16 %v169
    %v868 = vunpack.c.h.b16 %v169
    %v869 = vunpack.c.l.b16 %v170
    %v870 = vunpack.c.h.b16 %v170
    %v871 = vunpack.c.l.b16 %v171
    %v872 = vunpack.c.h.b16 %v171
    %v873 = vunpack.c.l.b16 %v172
    %v874 = vunpack.c.h.b16 %v172
    %v875 = vunpack.c.l.b16 %v173
    %v876 = vunpack.c.h.b16 %v173
    %v877 = vunpack.c.l.b16 %v174
    %v878 = vunpack.c.h.b16 %v174
    %v879 = vunpack.c.l.b16 %v175
    %v880 = vunpack.c.h.b16 %v175
    %v881 = vunpack.c.l.b16 %v176
    %v882 = vunpack.c.h.b16 %v176
    %v883 = vunpack.c.l.b16 %v177
    %v884 = vunpack.c.h.b16 %v177
    %v885 = vunpack.c.l.b16 %v178
    %v886 = vunpack.c.h.b16 %v178
    %v887 = vunpack.c.l.b16 %v179
    %v888 = vunpack.c.h.b16 %v179
    %v889 = vunpack.c.l.b16 %v180
    %v890 = vunpack.c.h.b16 %v180
    %v891 = vunpack.c.l.b16 %v181
    %v892 = vunpack.c.h.b16 %v181
    %v893 = vunpack.c.l.b16 %v182
    %v894 = vunpack.c.h.b16 %v182
    %v895 = vunpack.c.l.b16 %v183
    %v896 = vunpack.c.h.b16 %v183
    %v897 = vunpack.c.l.b16 %v184
    %v898 = vunpack.c.h.b16 %v184
    %v899 = vunpack.c.l.b16 %v185
    %v900 = vunpack.c.h.b16 %v185
    %v901 = vunpack.c.l.b16 %v186
    %v902 = vunpack.c.h.b16 %v186
    %v903 = vunpack.c.l.b16 %v187
    %v904 = vunpack.c.h.b16 %v187
    %v905 = vunpack.c.l.b16 %v188
    %v906 = vunpack.c.h.b16 %v188
    %v907 = vunpack.c.l.b16 %v189
    %v908 = vunpack.c.h.b16 %v189
    %v909 = vunpack.c.l.b16 %v190
    %v910 = vunpack.c.h.b16 %v190
    %v911 = vunpack.c.l.b16 %v191
    %v912 = vunpack.c.h.b16 %v191
    %v913 = vunpack.c.l.b16 %v192
    %v914 = vunpack.c.h.b16 %v192
    %v915 = vunpack.c.l.b16 %v193
    %v916 = vunpack.c.h.b16 %v193
    %v917 = vunpack.c.l.b16 %v194
    %v918 = vunpack.c.h.b16 %v194
    %v919 = vunpack.c.l.b16 %v195
    %v920 = vunpack.c.h.b16 %v195
    %v921 = vunpack.c.l.b16 %v196
    %v922 = vunpack.c.h.b16 %v196
    %v923 = vunpack.c.l.b16 %v197
    %v924 = vunpack.c.h.b16 %v197
    %v925 = vunpack.c.l.b16 %v198
    %v926 = vunpack.c.h.b16 %v198
    %v927 = vunpack.c.l.b16 %v199
    %v928 = vunpack.c.h.b16 %v199
    %v929 = vunpack.c.l.b16 %v200
    %v930 = vunpack.c.h.b16 %v200
    %v931 = vunpack.c.l.b16 %v201
    %v932 = vunpack.c.h.b16 %v201
    %v933 = vunpack.c.l.b16 %v202
    %v934 = vunpack.c.h.b16 %v202
    %v935 = vunpack.c.l.b16 %v203
    %v936 = vunpack.c.h.b16 %v203
    %v937 = vunpack.c.l.b16 %v204
    %v938 = vunpack.c.h.b16 %v204
    %v939 = vunpack.c.l.b16 %v205
    %v940 = vunpack.c.h.b16 %v205
    %v941 = vunpack.c.l.b16 %v206
    %v942 = vunpack.c.h.b16 %v206
    %v943 = vunpack.c.l.b16 %v207
    %v944 = vunpack.c.h.b16 %v207
    %v945 = vunpack.c.l.b16 %v208
    %v946 = vunpack.c.h.b16 %v208
    %v947 = vunpack.c.l.b16 %v209
    %v948 = vunpack.c.h.b16 %v209
    %v949 = vunpack.c.l.b16 %v210
    %v950 = vunpack.c.h.b16 %v210
    %v951 = vunpack.c.l.b16 %v211
    %v952 = vunpack.c.h.b16 %v211
    %v953 = vunpack.c.l.b16 %v212
    %v954 = vunpack.c.h.b16 %v212
    %v955 = vunpack.c.l.b16 %v213
    %v956 = vunpack.c.h.b16 %v213
    %v957 = vunpack.c.l.b16 %v214
    %v958 = vunpack.c.h.b16 %v214
    %v959 = vunpack.c.l.b16 %v215
    %v960 = vunpack.c.h.b16 %v215
    %v961 = vunpack.c.l.b16 %v216
    %v962 = vunpack.c.h.b16 %v216
    %v963 = vunpack.c.l.b16 %v217
    %v964 = vunpack.c.h.b16 %v217
    %v965 = vunpack.c.l.b16 %v218
    %v966 = vunpack.c.h.b16 %v218
    %v967 = vunpack.c.l.b16 %v219
    %v968 = vunpack.c.h.b16 %v219
    %v969 = vunpack.c.l.b16 %v220
    %v970 = vunpack.c.h.b16 %v220
    %v971 = vunpack.c.l.b16 %v221
    %v972 = vunpack.c.h.b16 %v221
    %v973 = vunpack.c.l.b16 %v222
    %v974 = vunpack.c.h.b16 %v222
    %v975 = vunpack.c.l.b16 %v223
    %v976 = vunpack.c.h.b16 %v223
    %v977 = vunpack.c.l.b16 %v224
    %v978 = vunpack.c.h.b16 %v224
    %v979 = vunpack.c.l.b16 %v225
    %v980 = vunpack.c.h.b16 %v225
    %v981 = vunpack.c.l.b16 %v226
    %v982 = vunpack.c.h.b16 %v226
    %v983 = vunpack.c.l.b16 %v227
    %v984 = vunpack.c.h.b16 %v227
    %v985 = vunpack.c.l.b16 %v228
    %v986 = vunpack.c.h.b16 %v228
    %v987 = vunpack.c.l.b16 %v229
    %v988 = vunpack.c.h.b16 %v229
    %v989 = vunpack.c.l.b16 %v230
    %v990 = vunpack.c.h.b16 %v230
    %v991 = vunpack.c.l.b16 %v231
    %v992 = vunpack.c.h.b16 %v231
    %v993 = vunpack.c.l.b16 %v232
    %v994 = vunpack.c.h.b16 %v232
    %v995 = vunpack.c.l.b16 %v233
    %v996 = vunpack.c.h.b16 %v233
    %v997 = vunpack.c.l.b16 %v234
    %v998 = vunpack.c.h.b16 %v234
    %v999 = vunpack.c.l.b16 %v235
    %v1000 = vunpack.c.h.b16 %v235
    %v1001 = vunpack.c.l.b16 %v236
    %v1002 = vunpack.c.h.b16 %v236
    %v1003 = vunpack.c.l.b16 %v237
    %v1004 = vunpack.c.h.b16 %v237
    %v1005 = vunpack.c.l.b16 %v238
    %v1006 = vunpack.c.h.b16 %v238
    %v1007 = vunpack.c.l.b16 %v239
    %v1008 = vunpack.c.h.b16 %v239
    %v1009 = vunpack.c.l.b16 %v240
    %v1010 = vunpack.c.h.b16 %v240
    %v1011 = vunpack.c.l.b16 %v241
    %v1012 = vunpack.c.h.b16 %v241
    %v1013 = vunpack.c.l.b16 %v242
    %v1014 = vunpack.c.h.b16 %v242
    %v1015 = vunpack.c.l.b16 %v243
    %v1016 = vunpack.c.h.b16 %v243
    %v1017 = vunpack.c.l.b16 %v244
    %v1018 = vunpack.c.h.b16 %v244
    %v1019 = vunpack.c.l.b16 %v245
    %v1020 = vunpack.c.h.b16 %v245
    %v1021 = vunpack.c.l.b16 %v246
    %v1022 = vunpack.c.h.b16 %v246
    %v1023 = vunpack.c.l.b16 %v247
    %v1024 = vunpack.c.h.b16 %v247
    %v1025 = vunpack.c.l.b16 %v248
    %v1026 = vunpack.c.h.b16 %v248
    %v1027 = vunpack.c.l.b16 %v249
    %v1028 = vunpack.c.h.b16 %v249
    %v1029 = vunpack.c.l.b16 %v250
    %v1030 = vunpack.c.h.b16 %v250
    %v1031 = vunpack.c.l.b16 %v251
    %v1032 = vunpack.c.h.b16 %v251
    %v1033 = vunpack.c.l.b16 %v252
    %v1034 = vunpack.c.h.b16 %v252
    %v1035 = vunpack.c.l.b16 %v253
    %v1036 = vunpack.c.h.b16 %v253
    %v1037 = vunpack.c.l.b16 %v254
    %v1038 = vunpack.c.h.b16 %v254
    %v1039 = vunpack.c.l.b16 %v255
    %v1040 = vunpack.c.h.b16 %v255
    %v1041 = vunpack.c.l.b16 %v256
    %v1042 = vunpack.c.h.b16 %v256
    %v1043 = vunpack.c.l.b16 %v257
    %v1044 = vunpack.c.h.b16 %v257
    %v1045 = vunpack.c.l.b16 %v258
    %v1046 = vunpack.c.h.b16 %v258
    %v1047 = vunpack.c.l.b16 %v259
    %v1048 = vunpack.c.h.b16 %v259
    %v1049 = vunpack.c.l.b16 %v260
    %v1050 = vunpack.c.h.b16 %v260
    %v1051 = vunpack.c.l.b16 %v261
    %v1052 = vunpack.c.h.b16 %v261
    %v1053 = vunpack.c.l.b16 %v262
    %v1054 = vunpack.c.h.b16 %v262
    %v1055 = vunpack.c.l.b16 %v263
    %v1056 = vunpack.c.h.b16 %v263
    %v1057 = vunpack.c.l.b16 %v264
    %v1058 = vunpack.c.h.b16 %v264
    %v1059 = vunpack.c.l.b16 %v265
    %v1060 = vunpack.c.h.b16 %v265
    %v1061 = vunpack.c.l.b16 %v266
    %v1062 = vunpack.c.h.b16 %v266
    %v1063 = vunpack.c.l.b16 %v267
    %v1064 = vunpack.c.h.b16 %v267
    %v1065 = vunpack.c.l.b16 %v268
    %v1066 = vunpack.c.h.b16 %v268
    %v1067 = vunpack.c.l.b16 %v269
    %v1068 = vunpack.c.h.b16 %v269
    %v1069 = vunpack.c.l.b16 %v270
    %v1070 = vunpack.c.h.b16 %v270
    %v1071 = vpack.c.b16 %v785, %v783
    %v1072 = vpack.c.b16 %v786, %v784
    %v1073 = vpack.c.b16 %v789, %v787
    %v1074 = vpack.c.b16 %v790, %v788
    %v1075 = vpack.c.b16 %v793, %v791
    %v1076 = vpack.c.b16 %v794, %v792
    %v1077 = vpack.c.b16 %v797, %v795
    %v1078 = vpack.c.b16 %v798, %v796
    %v1079 = vpack.c.b16 %v801, %v799
    %v1080 = vpack.c.b16 %v802, %v800
    %v1081 = vpack.c.b16 %v805, %v803
    %v1082 = vpack.c.b16 %v806, %v804
    %v1083 = vpack.c.b16 %v809, %v807
    %v1084 = vpack.c.b16 %v810, %v808
    %v1085 = vpack.c.b16 %v813, %v811
    %v1086 = vpack.c.b16 %v814, %v812
    %v1087 = vpack.c.b16 %v817, %v815
    %v1088 = vpack.c.b16 %v818, %v816
    %v1089 = vpack.c.b16 %v821, %v819
    %v1090 = vpack.c.b16 %v822, %v820
    %v1091 = vpack.c.b16 %v825, %v823
    %v1092 = vpack.c.b16 %v826, %v824
    %v1093 = vpack.c.b16 %v829, %v827
    %v1094 = vpack.c.b16 %v830, %v828
    %v1095 = vpack.c.b16 %v833, %v831
    %v1096 = vpack.c.b16 %v834, %v832
    %v1097 = vpack.c.b16 %v837, %v835
    %v1098 = vpack.c.b16 %v838, %v836
    %v1099 = vpack.c.b16 %v841, %v839
    %v1100 = vpack.c.b16 %v842, %v840
    %v1101 = vpack.c.b16 %v845, %v843
    %v1102 = vpack.c.b16 %v846, %v844
    %v1103 = vpack.c.b16 %v849, %v847
    %v1104 = vpack.c.b16 %v850, %v848
    %v1105 = vpack.c.b16 %v853, %v851
    %v1106 = vpack.c.b16 %v854, %v852
    %v1107 = vpack.c.b16 %v857, %v855
    %v1108 = vpack.c.b16 %v858, %v856
    %v1109 = vpack.c.b16 %v861, %v859
    %v1110 = vpack.c.b16 %v862, %v860
    %v1111 = vpack.c.b16 %v865, %v863
    %v1112 = vpack.c.b16 %v866, %v864
    %v1113 = vpack.c.b16 %v869, %v867
    %v1114 = vpack.c.b16 %v870, %v868
    %v1115 = vpack.c.b16 %v873, %v871
    %v1116 = vpack.c.b16 %v874, %v872
    %v1117 = vpack.c.b16 %v877, %v875
    %v1118 = vpack.c.b16 %v878, %v876
    %v1119 = vpack.c.b16 %v881, %v879
    %v1120 = vpack.c.b16 %v882, %v880
    %v1121 = vpack.c.b16 %v885, %v883
    %v1122 = vpack.c.b16 %v886, %v884
    %v1123 = vpack.c.b16 %v889, %v887
    %v1124 = vpack.c.b16 %v890, %v888
    %v1125 = vpack.c.b16 %v893, %v891
    %v1126 = vpack.c.b16 %v894, %v892
    %v1127 = vpack.c.b16 %v897, %v895
    %v1128 = vpack.c.b16 %v898, %v896
    %v1129 = vpack.c.b16 %v901, %v899
    %v1130 = vpack.c.b16 %v902, %v900
    %v1131 = vpack.c.b16 %v905, %v903
    %v1132 = vpack.c.b16 %v906, %v904
    %v1133 = vpack.c.b16 %v909, %v907
    %v1134 = vpack.c.b16 %v910, %v908
    %v1135 = vpack.c.b16 %v913, %v911
    %v1136 = vpack.c.b16 %v914, %v912
    %v1137 = vpack.c.b16 %v917, %v915
    %v1138 = vpack.c.b16 %v918, %v916
    %v1139 = vpack.c.b16 %v921, %v919
    %v1140 = vpack.c.b16 %v922, %v920
    %v1141 = vpack.c.b16 %v925, %v923
    %v1142 = vpack.c.b16 %v926, %v924
    %v1143 = vpack.c.b16 %v929, %v927
    %v1144 = vpack.c.b16 %v930, %v928
    %v1145 = vpack.c.b16 %v933, %v931
    %v1146 = vpack.c.b16 %v934, %v932
    %v1147 = vpack.c.b16 %v937, %v935
    %v1148 = vpack.c.b16 %v938, %v936
    %v1149 = vpack.c.b16 %v941, %v939
    %v1150 = vpack.c.b16 %v942, %v940
    %v1151 = vpack.c.b16 %v945, %v943
    %v1152 = vpack.c.b16 %v946, %v944
    %v1153 = vpack.c.b16 %v949, %v947
    %v1154 = vpack.c.b16 %v950, %v948
    %v1155 = vpack.c.b16 %v953, %v951
    %v1156 = vpack.c.b16 %v954, %v952
    %v1157 = vpack.c.b16 %v957, %v955
    %v1158 = vpack.c.b16 %v958, %v956
    %v1159 = vpack.c.b16 %v961, %v959
    %v1160 = vpack.c.b16 %v962, %v960
    %v1161 = vpack.c.b16 %v965, %v963
    %v1162 = vpack.c.b16 %v966, %v964
    %v1163 = vpack.c.b16 %v969, %v967
    %v1164 = vpack.c.b16 %v970, %v968
    %v1165 = vpack.c.b16 %v973, %v971
    %v1166 = vpack.c.b16 %v974, %v972
    %v1167 = vpack.c.b16 %v977, %v975
    %v1168 = vpack.c.b16 %v978, %v976
    %v1169 = vpack.c.b16 %v981, %v979
    %v1170 = vpack.c.b16 %v982, %v980
    %v1171 = vpack.c.b16 %v985, %v983
    %v1172 = vpack.c.b16 %v986, %v984
    %v1173 = vpack.c.b16 %v989, %v987
    %v1174 = vpack.c.b16 %v990, %v988
    %v1175 = vpack.c.b16 %v993, %v991
    %v1176 = vpack.c.b16 %v994, %v992
    %v1177 = vpack.c.b16 %v997, %v995
    %v1178 = vpack.c.b16 %v998, %v996
    %v1179 = vpack.c.b16 %v1001, %v999
    %v1180 = vpack.c.b16 %v1002, %v1000
    %v1181 = vpack.c.b16 %v1005, %v1003
    %v1182 = vpack.c.b16 %v1006, %v1004
    %v1183 = vpack.c.b16 %v1009, %v1007
    %v1184 = vpack.c.b16 %v1010, %v1008
    %v1185 = vpack.c.b16 %v1013, %v1011
    %v1186 = vpack.c.b16 %v1014, %v1012
    %v1187 = vpack.c.b16 %v1017, %v1015
    %v1188 = vpack.c.b16 %v1018, %v1016
    %v1189 = vpack.c.b16 %v1021, %v1019
    %v1190 = vpack.c.b16 %v1022, %v1020
    %v1191 = vpack.c.b16 %v1025, %v1023
    %v1192 = vpack.c.b16 %v1026, %v1024
    %v1193 = vpack.c.b16 %v1029, %v1027
    %v1194 = vpack.c.b16 %v1030, %v1028
    %v1195 = vpack.c.b16 %v1033, %v1031
    %v1196 = vpack.c.b16 %v1034, %v1032
    %v1197 = vpack.c.b16 %v1037, %v1035
    %v1198 = vpack.c.b16 %v1038, %v1036
    %v1199 = vpack.c.b16 %v1041, %v1039
    %v1200 = vpack.c.b16 %v1042, %v1040
    %v1201 = vpack.c.b16 %v1045, %v1043
    %v1202 = vpack.c.b16 %v1046, %v1044
    %v1203 = vpack.c.b16 %v1049, %v1047
    %v1204 = vpack.c.b16 %v1050, %v1048
    %v1205 = vpack.c.b16 %v1053, %v1051
    %v1206 = vpack.c.b16 %v1054, %v1052
    %v1207 = vpack.c.b16 %v1057, %v1055
    %v1208 = vpack.c.b16 %v1058, %v1056
    %v1209 = vpack.c.b16 %v1061, %v1059
    %v1210 = vpack.c.b16 %v1062, %v1060
    %v1211 = vpack.c.b16 %v1065, %v1063
    %v1212 = vpack.c.b16 %v1066, %v1064
    %v1213 = vpack.c.b16 %v1069, %v1067
    %v1214 = vpack.c.b16 %v1070, %v1068
    %1359 = vmatprep.subr.bf16.mxu0 %v1072
    %1360 = vmatpush1.bf16.msra.mxu0 %v1071
    %1361 = vmatprep.subr.bf16.mxu0 %v1074
    %1362 = vmatpush1.bf16.msra.mxu0 %v1073
    %1363 = vmatprep.subr.bf16.mxu0 %v1076
    %1364 = vmatpush1.bf16.msra.mxu0 %v1075
    %1365 = vmatprep.subr.bf16.mxu0 %v1078
    %1366 = vmatpush1.bf16.msra.mxu0 %v1077
    %1367 = vmatprep.subr.bf16.mxu0 %v1080
    %1368 = vmatpush1.bf16.msra.mxu0 %v1079
    %1369 = vmatprep.subr.bf16.mxu0 %v1082
    %1370 = vmatpush1.bf16.msra.mxu0 %v1081
    %1371 = vmatprep.subr.bf16.mxu0 %v1084
    %1372 = vmatpush1.bf16.msra.mxu0 %v1083
    %1373 = vmatprep.subr.bf16.mxu0 %v1086
    %1374 = vmatpush1.bf16.msra.mxu0 %v1085
    %1375 = vmatprep.subr.bf16.mxu0 %v1088
    %1376 = vmatpush1.bf16.msra.mxu0 %v1087
    %1377 = vmatprep.subr.bf16.mxu0 %v1090
    %1378 = vmatpush1.bf16.msra.mxu0 %v1089
    %1379 = vmatprep.subr.bf16.mxu0 %v1092
    %1380 = vmatpush1.bf16.msra.mxu0 %v1091
    %1381 = vmatprep.subr.bf16.mxu0 %v1094
    %1382 = vmatpush1.bf16.msra.mxu0 %v1093
    %1383 = vmatprep.subr.bf16.mxu0 %v1096
    %1384 = vmatpush1.bf16.msra.mxu0 %v1095
    %1385 = vmatprep.subr.bf16.mxu0 %v1098
    %1386 = vmatpush1.bf16.msra.mxu0 %v1097
    %1387 = vmatprep.subr.bf16.mxu0 %v1100
    %1388 = vmatpush1.bf16.msra.mxu0 %v1099
    %1389 = vmatprep.subr.bf16.mxu0 %v1102
    %1390 = vmatpush1.bf16.msra.mxu0 %v1101
    %1391 = vmatprep.mubr.bf16.mxu0 %v496
    %1392 = vmatmul.mubr.bf16.gmra.mrb[0].mxu0 %v495
    %v1393 = vpop.f32.mrb[0].mxu0
    %v1394 = vadd.f32 0.0, %v1393
    %v1395 = vpop.f32.mrb[0].mxu0
    %v1396 = vadd.f32 0.0, %v1395
    %v1397 = vpop.f32.mrb[0].mxu0
    %v1398 = vadd.f32 0.0, %v1397
    %v1399 = vpop.f32.mrb[0].mxu0
    %v1400 = vadd.f32 0.0, %v1399
    %1401 = vmatprep.mubr.bf16.mxu0 %v505
    %1402 = vmatmul.mubr.bf16.gmra.mrb[0].mxu0 %v504
    %v1403 = vpop.f32.mrb[0].mxu0
    %v1404 = vadd.f32 0.0, %v1403
    %v1405 = vpop.f32.mrb[0].mxu0
    %v1406 = vadd.f32 0.0, %v1405
    %v1407 = vpop.f32.mrb[0].mxu0
    %v1408 = vadd.f32 0.0, %v1407
    %v1409 = vpop.f32.mrb[0].mxu0
    %v1410 = vadd.f32 0.0, %v1409
    %1411 = vmatprep.mubr.bf16.mxu0 %v514
    %1412 = vmatmul.mubr.bf16.gmra.mrb[0].mxu0 %v513
    %v1413 = vpop.f32.mrb[0].mxu0
    %v1414 = vadd.f32 0.0, %v1413
    %v1415 = vpop.f32.mrb[0].mxu0
    %v1416 = vadd.f32 0.0, %v1415
    %v1417 = vpop.f32.mrb[0].mxu0
    %v1418 = vadd.f32 0.0, %v1417
    %v1419 = vpop.f32.mrb[0].mxu0
    %v1420 = vadd.f32 0.0, %v1419
    %1421 = vmatprep.mubr.bf16.mxu0 %v523
    %1422 = vmatmul.mubr.bf16.gmra.mrb[0].mxu0 %v522
    %v1423 = vpop.f32.mrb[0].mxu0
    %v1424 = vadd.f32 0.0, %v1423
    %v1425 = vpop.f32.mrb[0].mxu0
    %v1426 = vadd.f32 0.0, %v1425
    %v1427 = vpop.f32.mrb[0].mxu0
    %v1428 = vadd.f32 0.0, %v1427
    %v1429 = vpop.f32.mrb[0].mxu0
    %v1430 = vadd.f32 0.0, %v1429
    %1431 = vmatprep.mubr.bf16.mxu0 %v532
    %1432 = vmatmul.mubr.bf16.gmra.mrb[0].mxu0 %v531
    %v1433 = vpop.f32.mrb[0].mxu0
    %v1434 = vadd.f32 0.0, %v1433
    %v1435 = vpop.f32.mrb[0].mxu0
    %v1436 = vadd.f32 0.0, %v1435
    %v1437 = vpop.f32.mrb[0].mxu0
    %v1438 = vadd.f32 0.0, %v1437
    %v1439 = vpop.f32.mrb[0].mxu0
    %v1440 = vadd.f32 0.0, %v1439
    %1441 = vmatprep.mubr.bf16.mxu0 %v541
    %1442 = vmatmul.mubr.bf16.gmra.mrb[0].mxu0 %v540
    %v1443 = vpop.f32.mrb[0].mxu0
    %v1444 = vadd.f32 0.0, %v1443
    %v1445 = vpop.f32.mrb[0].mxu0
    %v1446 = vadd.f32 0.0, %v1445
    %v1447 = vpop.f32.mrb[0].mxu0
    %v1448 = vadd.f32 0.0, %v1447
    %v1449 = vpop.f32.mrb[0].mxu0
    %v1450 = vadd.f32 0.0, %v1449
    %1451 = vmatprep.mubr.bf16.mxu0 %v550
    %1452 = vmatmul.mubr.bf16.gmra.mrb[0].mxu0 %v549
    %v1453 = vpop.f32.mrb[0].mxu0
    %v1454 = vadd.f32 0.0, %v1453
    %v1455 = vpop.f32.mrb[0].mxu0
    %v1456 = vadd.f32 0.0, %v1455
    %v1457 = vpop.f32.mrb[0].mxu0
    %v1458 = vadd.f32 0.0, %v1457
    %v1459 = vpop.f32.mrb[0].mxu0
    %v1460 = vadd.f32 0.0, %v1459
    %1461 = vmatprep.mubr.bf16.mxu0 %v559
    %1462 = vmatmul.mubr.bf16.gmra.mrb[0].mxu0 %v558
    %v1463 = vpop.f32.mrb[0].mxu0
    %v1464 = vadd.f32 0.0, %v1463
    %v1465 = vpop.f32.mrb[0].mxu0
    %v1466 = vadd.f32 0.0, %v1465
    %v1467 = vpop.f32.mrb[0].mxu0
    %v1468 = vadd.f32 0.0, %v1467
    %v1469 = vpop.f32.mrb[0].mxu0
    %v1470 = vadd.f32 0.0, %v1469
    %1471 = vdwg.mxu0
    %1472 = vmatprep.subr.bf16.mxu0 %v1104
    %1473 = vmatpush1.bf16.msra.mxu0 %v1103
    %1474 = vmatprep.subr.bf16.mxu0 %v1106
    %1475 = vmatpush1.bf16.msra.mxu0 %v1105
    %1476 = vmatprep.subr.bf16.mxu0 %v1108
    %1477 = vmatpush1.bf16.msra.mxu0 %v1107
    %1478 = vmatprep.subr.bf16.mxu0 %v1110
    %1479 = vmatpush1.bf16.msra.mxu0 %v1109
    %1480 = vmatprep.subr.bf16.mxu0 %v1112
    %1481 = vmatpush1.bf16.msra.mxu0 %v1111
    %1482 = vmatprep.subr.bf16.mxu0 %v1114
    %1483 = vmatpush1.bf16.msra.mxu0 %v1113
    %1484 = vmatprep.subr.bf16.mxu0 %v1116
    %1485 = vmatpush1.bf16.msra.mxu0 %v1115
    %1486 = vmatprep.subr.bf16.mxu0 %v1118
    %1487 = vmatpush1.bf16.msra.mxu0 %v1117
    %1488 = vmatprep.subr.bf16.mxu0 %v1120
    %1489 = vmatpush1.bf16.msra.mxu0 %v1119
    %1490 = vmatprep.subr.bf16.mxu0 %v1122
    %1491 = vmatpush1.bf16.msra.mxu0 %v1121
    %1492 = vmatprep.subr.bf16.mxu0 %v1124
    %1493 = vmatpush1.bf16.msra.mxu0 %v1123
    %1494 = vmatprep.subr.bf16.mxu0 %v1126
    %1495 = vmatpush1.bf16.msra.mxu0 %v1125
    %1496 = vmatprep.subr.bf16.mxu0 %v1128
    %1497 = vmatpush1.bf16.msra.mxu0 %v1127
    %1498 = vmatprep.subr.bf16.mxu0 %v1130
    %1499 = vmatpush1.bf16.msra.mxu0 %v1129
    %1500 = vmatprep.subr.bf16.mxu0 %v1132
    %1501 = vmatpush1.bf16.msra.mxu0 %v1131
    %1502 = vmatprep.subr.bf16.mxu0 %v1134
    %1503 = vmatpush1.bf16.msra.mxu0 %v1133
    %1504 = vmatprep.mubr.bf16.mxu0 %v498
    %1505 = vmatmul.mubr.bf16.gmra.mrb[0].mxu0 %v497
    %v1506 = vpop.f32.mrb[0].mxu0
    %v1507 = vadd.f32 %v1394, %v1506
    %v1508 = vpop.f32.mrb[0].mxu0
    %v1509 = vadd.f32 %v1396, %v1508
    %v1510 = vpop.f32.mrb[0].mxu0
    %v1511 = vadd.f32 %v1398, %v1510
    %v1512 = vpop.f32.mrb[0].mxu0
    %v1513 = vadd.f32 %v1400, %v1512
    %1514 = vmatprep.mubr.bf16.mxu0 %v507
    %1515 = vmatmul.mubr.bf16.gmra.mrb[0].mxu0 %v506
    %v1516 = vpop.f32.mrb[0].mxu0
    %v1517 = vadd.f32 %v1404, %v1516
    %v1518 = vpop.f32.mrb[0].mxu0
    %v1519 = vadd.f32 %v1406, %v1518
    %v1520 = vpop.f32.mrb[0].mxu0
    %v1521 = vadd.f32 %v1408, %v1520
    %v1522 = vpop.f32.mrb[0].mxu0
    %v1523 = vadd.f32 %v1410, %v1522
    %1524 = vmatprep.mubr.bf16.mxu0 %v516
    %1525 = vmatmul.mubr.bf16.gmra.mrb[0].mxu0 %v515
    %v1526 = vpop.f32.mrb[0].mxu0
    %v1527 = vadd.f32 %v1414, %v1526
    %v1528 = vpop.f32.mrb[0].mxu0
    %v1529 = vadd.f32 %v1416, %v1528
    %v1530 = vpop.f32.mrb[0].mxu0
    %v1531 = vadd.f32 %v1418, %v1530
    %v1532 = vpop.f32.mrb[0].mxu0
    %v1533 = vadd.f32 %v1420, %v1532
    %1534 = vmatprep.mubr.bf16.mxu0 %v525
    %1535 = vmatmul.mubr.bf16.gmra.mrb[0].mxu0 %v524
    %v1536 = vpop.f32.mrb[0].mxu0
    %v1537 = vadd.f32 %v1424, %v1536
    %v1538 = vpop.f32.mrb[0].mxu0
    %v1539 = vadd.f32 %v1426, %v1538
    %v1540 = vpop.f32.mrb[0].mxu0
    %v1541 = vadd.f32 %v1428, %v1540
    %v1542 = vpop.f32.mrb[0].mxu0
    %v1543 = vadd.f32 %v1430, %v1542
    %1544 = vmatprep.mubr.bf16.mxu0 %v534
    %1545 = vmatmul.mubr.bf16.gmra.mrb[0].mxu0 %v533
    %v1546 = vpop.f32.mrb[0].mxu0
    %v1547 = vadd.f32 %v1434, %v1546
    %v1548 = vpop.f32.mrb[0].mxu0
    %v1549 = vadd.f32 %v1436, %v1548
    %v1550 = vpop.f32.mrb[0].mxu0
    %v1551 = vadd.f32 %v1438, %v1550
    %v1552 = vpop.f32.mrb[0].mxu0
    %v1553 = vadd.f32 %v1440, %v1552
    %1554 = vmatprep.mubr.bf16.mxu0 %v543
    %1555 = vmatmul.mubr.bf16.gmra.mrb[0].mxu0 %v542
    %v1556 = vpop.f32.mrb[0].mxu0
    %v1557 = vadd.f32 %v1444, %v1556
    %v1558 = vpop.f32.mrb[0].mxu0
    %v1559 = vadd.f32 %v1446, %v1558
    %v1560 = vpop.f32.mrb[0].mxu0
    %v1561 = vadd.f32 %v1448, %v1560
    %v1562 = vpop.f32.mrb[0].mxu0
    %v1563 = vadd.f32 %v1450, %v1562
    %1564 = vmatprep.mubr.bf16.mxu0 %v552
    %1565 = vmatmul.mubr.bf16.gmra.mrb[0].mxu0 %v551
    %v1566 = vpop.f32.mrb[0].mxu0
    %v1567 = vadd.f32 %v1454, %v1566
    %v1568 = vpop.f32.mrb[0].mxu0
    %v1569 = vadd.f32 %v1456, %v1568
    %v1570 = vpop.f32.mrb[0].mxu0
    %v1571 = vadd.f32 %v1458, %v1570
    %v1572 = vpop.f32.mrb[0].mxu0
    %v1573 = vadd.f32 %v1460, %v1572
    %1574 = vmatprep.mubr.bf16.mxu0 %v561
    %1575 = vmatmul.mubr.bf16.gmra.mrb[0].mxu0 %v560
    %v1576 = vpop.f32.mrb[0].mxu0
    %v1577 = vadd.f32 %v1464, %v1576
    %v1578 = vpop.f32.mrb[0].mxu0
    %v1579 = vadd.f32 %v1466, %v1578
    %v1580 = vpop.f32.mrb[0].mxu0
    %v1581 = vadd.f32 %v1468, %v1580
    %v1582 = vpop.f32.mrb[0].mxu0
    %v1583 = vadd.f32 %v1470, %v1582
    %1584 = vdwg.mxu0
    %1585 = vmatprep.subr.bf16.mxu0 %v1136
    %1586 = vmatpush1.bf16.msra.mxu0 %v1135
    %1587 = vmatprep.subr.bf16.mxu0 %v1138
    %1588 = vmatpush1.bf16.msra.mxu0 %v1137
    %1589 = vmatprep.subr.bf16.mxu0 %v1140
    %1590 = vmatpush1.bf16.msra.mxu0 %v1139
    %1591 = vmatprep.subr.bf16.mxu0 %v1142
    %1592 = vmatpush1.bf16.msra.mxu0 %v1141
    %1593 = vmatprep.subr.bf16.mxu0 %v1144
    %1594 = vmatpush1.bf16.msra.mxu0 %v1143
    %1595 = vmatprep.subr.bf16.mxu0 %v1146
    %1596 = vmatpush1.bf16.msra.mxu0 %v1145
    %1597 = vmatprep.subr.bf16.mxu0 %v1148
    %1598 = vmatpush1.bf16.msra.mxu0 %v1147
    %1599 = vmatprep.subr.bf16.mxu0 %v1150
    %1600 = vmatpush1.bf16.msra.mxu0 %v1149
    %1601 = vmatprep.subr.bf16.mxu0 %v1152
    %1602 = vmatpush1.bf16.msra.mxu0 %v1151
    %1603 = vmatprep.subr.bf16.mxu0 %v1154
    %1604 = vmatpush1.bf16.msra.mxu0 %v1153
    %1605 = vmatprep.subr.bf16.mxu0 %v1156
    %1606 = vmatpush1.bf16.msra.mxu0 %v1155
    %1607 = vmatprep.subr.bf16.mxu0 %v1158
    %1608 = vmatpush1.bf16.msra.mxu0 %v1157
    %1609 = vmatprep.subr.bf16.mxu0 %v1160
    %1610 = vmatpush1.bf16.msra.mxu0 %v1159
    %1611 = vmatprep.subr.bf16.mxu0 %v1162
    %1612 = vmatpush1.bf16.msra.mxu0 %v1161
    %1613 = vmatprep.subr.bf16.mxu0 %v1164
    %1614 = vmatpush1.bf16.msra.mxu0 %v1163
    %1615 = vmatprep.subr.bf16.mxu0 %v1166
    %1616 = vmatpush1.bf16.msra.mxu0 %v1165
    %1617 = vmatprep.mubr.bf16.mxu0 %v500
    %1618 = vmatmul.mubr.bf16.gmra.mrb[0].mxu0 %v499
    %v1619 = vpop.f32.mrb[0].mxu0
    %v1620 = vadd.f32 %v1507, %v1619
    %v1621 = vpop.f32.mrb[0].mxu0
    %v1622 = vadd.f32 %v1509, %v1621
    %v1623 = vpop.f32.mrb[0].mxu0
    %v1624 = vadd.f32 %v1511, %v1623
    %v1625 = vpop.f32.mrb[0].mxu0
    %v1626 = vadd.f32 %v1513, %v1625
    %1627 = vmatprep.mubr.bf16.mxu0 %v509
    %1628 = vmatmul.mubr.bf16.gmra.mrb[0].mxu0 %v508
    %v1629 = vpop.f32.mrb[0].mxu0
    %v1630 = vadd.f32 %v1517, %v1629
    %v1631 = vpop.f32.mrb[0].mxu0
    %v1632 = vadd.f32 %v1519, %v1631
    %v1633 = vpop.f32.mrb[0].mxu0
    %v1634 = vadd.f32 %v1521, %v1633
    %v1635 = vpop.f32.mrb[0].mxu0
    %v1636 = vadd.f32 %v1523, %v1635
    %1637 = vmatprep.mubr.bf16.mxu0 %v518
    %1638 = vmatmul.mubr.bf16.gmra.mrb[0].mxu0 %v517
    %v1639 = vpop.f32.mrb[0].mxu0
    %v1640 = vadd.f32 %v1527, %v1639
    %v1641 = vpop.f32.mrb[0].mxu0
    %v1642 = vadd.f32 %v1529, %v1641
    %v1643 = vpop.f32.mrb[0].mxu0
    %v1644 = vadd.f32 %v1531, %v1643
    %v1645 = vpop.f32.mrb[0].mxu0
    %v1646 = vadd.f32 %v1533, %v1645
    %1647 = vmatprep.mubr.bf16.mxu0 %v527
    %1648 = vmatmul.mubr.bf16.gmra.mrb[0].mxu0 %v526
    %v1649 = vpop.f32.mrb[0].mxu0
    %v1650 = vadd.f32 %v1537, %v1649
    %v1651 = vpop.f32.mrb[0].mxu0
    %v1652 = vadd.f32 %v1539, %v1651
    %v1653 = vpop.f32.mrb[0].mxu0
    %v1654 = vadd.f32 %v1541, %v1653
    %v1655 = vpop.f32.mrb[0].mxu0
    %v1656 = vadd.f32 %v1543, %v1655
    %1657 = vmatprep.mubr.bf16.mxu0 %v536
    %1658 = vmatmul.mubr.bf16.gmra.mrb[0].mxu0 %v535
    %v1659 = vpop.f32.mrb[0].mxu0
    %v1660 = vadd.f32 %v1547, %v1659
    %v1661 = vpop.f32.mrb[0].mxu0
    %v1662 = vadd.f32 %v1549, %v1661
    %v1663 = vpop.f32.mrb[0].mxu0
    %v1664 = vadd.f32 %v1551, %v1663
    %v1665 = vpop.f32.mrb[0].mxu0
    %v1666 = vadd.f32 %v1553, %v1665
    %1667 = vmatprep.mubr.bf16.mxu0 %v545
    %1668 = vmatmul.mubr.bf16.gmra.mrb[0].mxu0 %v544
    %v1669 = vpop.f32.mrb[0].mxu0
    %v1670 = vadd.f32 %v1557, %v1669
    %v1671 = vpop.f32.mrb[0].mxu0
    %v1672 = vadd.f32 %v1559, %v1671
    %v1673 = vpop.f32.mrb[0].mxu0
    %v1674 = vadd.f32 %v1561, %v1673
    %v1675 = vpop.f32.mrb[0].mxu0
    %v1676 = vadd.f32 %v1563, %v1675
    %1677 = vmatprep.mubr.bf16.mxu0 %v554
    %1678 = vmatmul.mubr.bf16.gmra.mrb[0].mxu0 %v553
    %v1679 = vpop.f32.mrb[0].mxu0
    %v1680 = vadd.f32 %v1567, %v1679
    %v1681 = vpop.f32.mrb[0].mxu0
    %v1682 = vadd.f32 %v1569, %v1681
    %v1683 = vpop.f32.mrb[0].mxu0
    %v1684 = vadd.f32 %v1571, %v1683
    %v1685 = vpop.f32.mrb[0].mxu0
    %v1686 = vadd.f32 %v1573, %v1685
    %1687 = vmatprep.mubr.bf16.mxu0 %v563
    %1688 = vmatmul.mubr.bf16.gmra.mrb[0].mxu0 %v562
    %v1689 = vpop.f32.mrb[0].mxu0
    %v1690 = vadd.f32 %v1577, %v1689
    %v1691 = vpop.f32.mrb[0].mxu0
    %v1692 = vadd.f32 %v1579, %v1691
    %v1693 = vpop.f32.mrb[0].mxu0
    %v1694 = vadd.f32 %v1581, %v1693
    %v1695 = vpop.f32.mrb[0].mxu0
    %v1696 = vadd.f32 %v1583, %v1695
    %1697 = vdwg.mxu0
    %1698 = vmatprep.subr.bf16.mxu0 %v1168
    %1699 = vmatpush1.bf16.msra.mxu0 %v1167
    %1700 = vmatprep.subr.bf16.mxu0 %v1170
    %1701 = vmatpush1.bf16.msra.mxu0 %v1169
    %1702 = vmatprep.subr.bf16.mxu0 %v1172
    %1703 = vmatpush1.bf16.msra.mxu0 %v1171
    %1704 = vmatprep.subr.bf16.mxu0 %v1174
    %1705 = vmatpush1.bf16.msra.mxu0 %v1173
    %1706 = vmatprep.subr.bf16.mxu0 %v1176
    %1707 = vmatpush1.bf16.msra.mxu0 %v1175
    %1708 = vmatprep.subr.bf16.mxu0 %v1178
    %1709 = vmatpush1.bf16.msra.mxu0 %v1177
    %1710 = vmatprep.subr.bf16.mxu0 %v1180
    %1711 = vmatpush1.bf16.msra.mxu0 %v1179
    %1712 = vmatprep.subr.bf16.mxu0 %v1182
    %1713 = vmatpush1.bf16.msra.mxu0 %v1181
    %1714 = vmatprep.subr.bf16.mxu0 %v1184
    %1715 = vmatpush1.bf16.msra.mxu0 %v1183
    %1716 = vmatprep.subr.bf16.mxu0 %v1186
    %1717 = vmatpush1.bf16.msra.mxu0 %v1185
    %1718 = vmatprep.subr.bf16.mxu0 %v1188
    %1719 = vmatpush1.bf16.msra.mxu0 %v1187
    %1720 = vmatprep.subr.bf16.mxu0 %v1190
    %1721 = vmatpush1.bf16.msra.mxu0 %v1189
    %1722 = vmatprep.subr.bf16.mxu0 %v1192
    %1723 = vmatpush1.bf16.msra.mxu0 %v1191
    %1724 = vmatprep.subr.bf16.mxu0 %v1194
    %1725 = vmatpush1.bf16.msra.mxu0 %v1193
    %1726 = vmatprep.subr.bf16.mxu0 %v1196
    %1727 = vmatpush1.bf16.msra.mxu0 %v1195
    %1728 = vmatprep.subr.bf16.mxu0 %v1198
    %1729 = vmatpush1.bf16.msra.mxu0 %v1197
    %1730 = vmatprep.mubr.bf16.mxu0 %v502
    %1731 = vmatmul.mubr.bf16.gmra.mrb[0].mxu0 %v501
    %v1732 = vpop.f32.mrb[0].mxu0
    %v1733 = vadd.f32 %v1620, %v1732
    %v1734 = vpop.f32.mrb[0].mxu0
    %v1735 = vadd.f32 %v1622, %v1734
    %v1736 = vpop.f32.mrb[0].mxu0
    %v1737 = vadd.f32 %v1624, %v1736
    %v1738 = vpop.f32.mrb[0].mxu0
    %v1739 = vadd.f32 %v1626, %v1738
    %1740 = vmatprep.mubr.bf16.mxu0 %v511
    %1741 = vmatmul.mubr.bf16.gmra.mrb[0].mxu0 %v510
    %v1742 = vpop.f32.mrb[0].mxu0
    %v1743 = vadd.f32 %v1630, %v1742
    %v1744 = vpop.f32.mrb[0].mxu0
    %v1745 = vadd.f32 %v1632, %v1744
    %v1746 = vpop.f32.mrb[0].mxu0
    %v1747 = vadd.f32 %v1634, %v1746
    %v1748 = vpop.f32.mrb[0].mxu0
    %v1749 = vadd.f32 %v1636, %v1748
    %1750 = vmatprep.mubr.bf16.mxu0 %v520
    %1751 = vmatmul.mubr.bf16.gmra.mrb[0].mxu0 %v519
    %v1752 = vpop.f32.mrb[0].mxu0
    %v1753 = vadd.f32 %v1640, %v1752
    %v1754 = vpop.f32.mrb[0].mxu0
    %v1755 = vadd.f32 %v1642, %v1754
    %v1756 = vpop.f32.mrb[0].mxu0
    %v1757 = vadd.f32 %v1644, %v1756
    %v1758 = vpop.f32.mrb[0].mxu0
    %v1759 = vadd.f32 %v1646, %v1758
    %1760 = vmatprep.mubr.bf16.mxu0 %v529
    %1761 = vmatmul.mubr.bf16.gmra.mrb[0].mxu0 %v528
    %v1762 = vpop.f32.mrb[0].mxu0
    %v1763 = vadd.f32 %v1650, %v1762
    %v1764 = vpop.f32.mrb[0].mxu0
    %v1765 = vadd.f32 %v1652, %v1764
    %v1766 = vpop.f32.mrb[0].mxu0
    %v1767 = vadd.f32 %v1654, %v1766
    %v1768 = vpop.f32.mrb[0].mxu0
    %v1769 = vadd.f32 %v1656, %v1768
    %1770 = vmatprep.mubr.bf16.mxu0 %v538
    %1771 = vmatmul.mubr.bf16.gmra.mrb[0].mxu0 %v537
    %v1772 = vpop.f32.mrb[0].mxu0
    %v1773 = vadd.f32 %v1660, %v1772
    %v1774 = vpop.f32.mrb[0].mxu0
    %v1775 = vadd.f32 %v1662, %v1774
    %v1776 = vpop.f32.mrb[0].mxu0
    %v1777 = vadd.f32 %v1664, %v1776
    %v1778 = vpop.f32.mrb[0].mxu0
    %v1779 = vadd.f32 %v1666, %v1778
    %1780 = vmatprep.mubr.bf16.mxu0 %v547
    %1781 = vmatmul.mubr.bf16.gmra.mrb[0].mxu0 %v546
    %v1782 = vpop.f32.mrb[0].mxu0
    %v1783 = vadd.f32 %v1670, %v1782
    %v1784 = vpop.f32.mrb[0].mxu0
    %v1785 = vadd.f32 %v1672, %v1784
    %v1786 = vpop.f32.mrb[0].mxu0
    %v1787 = vadd.f32 %v1674, %v1786
    %v1788 = vpop.f32.mrb[0].mxu0
    %v1789 = vadd.f32 %v1676, %v1788
    %1790 = vmatprep.mubr.bf16.mxu0 %v556
    %1791 = vmatmul.mubr.bf16.gmra.mrb[0].mxu0 %v555
    %v1792 = vpop.f32.mrb[0].mxu0
    %v1793 = vadd.f32 %v1680, %v1792
    %v1794 = vpop.f32.mrb[0].mxu0
    %v1795 = vadd.f32 %v1682, %v1794
    %v1796 = vpop.f32.mrb[0].mxu0
    %v1797 = vadd.f32 %v1684, %v1796
    %v1798 = vpop.f32.mrb[0].mxu0
    %v1799 = vadd.f32 %v1686, %v1798
    %1800 = vmatprep.mubr.bf16.mxu0 %v565
    %1801 = vmatmul.mubr.bf16.gmra.mrb[0].mxu0 %v564
    %v1802 = vpop.f32.mrb[0].mxu0
    %v1803 = vadd.f32 %v1690, %v1802
    %v1804 = vpop.f32.mrb[0].mxu0
    %v1805 = vadd.f32 %v1692, %v1804
    %v1806 = vpop.f32.mrb[0].mxu0
    %v1807 = vadd.f32 %v1694, %v1806
    %v1808 = vpop.f32.mrb[0].mxu0
    %v1809 = vadd.f32 %v1696, %v1808
    %1810 = vdwg.mxu0
    %1811 = vmatprep.subr.bf16.mxu0 %v1200
    %1812 = vmatpush1.bf16.msra.mxu0 %v1199
    %1813 = vmatprep.subr.bf16.mxu0 %v1202
    %1814 = vmatpush1.bf16.msra.mxu0 %v1201
    %1815 = vmatprep.subr.bf16.mxu0 %v1204
    %1816 = vmatpush1.bf16.msra.mxu0 %v1203
    %1817 = vmatprep.subr.bf16.mxu0 %v1206
    %1818 = vmatpush1.bf16.msra.mxu0 %v1205
    %1819 = vmatprep.subr.bf16.mxu0 %v1208
    %1820 = vmatpush1.bf16.msra.mxu0 %v1207
    %1821 = vmatprep.subr.bf16.mxu0 %v1210
    %1822 = vmatpush1.bf16.msra.mxu0 %v1209
    %1823 = vmatprep.subr.bf16.mxu0 %v1212
    %1824 = vmatpush1.bf16.msra.mxu0 %v1211
    %1825 = vmatprep.subr.bf16.mxu0 %v1214
    %1826 = vmatpush1.bf16.msra.mxu0 %v1213
    %1827 = vmatprep.subr.bf16.mxu0 0
    %1828 = vmatpush1.bf16.msra.mxu0 0
    %1829 = vmatprep.subr.bf16.mxu0 0
    %1830 = vmatpush1.bf16.msra.mxu0 0
    %1831 = vmatprep.subr.bf16.mxu0 0
    %1832 = vmatpush1.bf16.msra.mxu0 0
    %1833 = vmatprep.subr.bf16.mxu0 0
    %1834 = vmatpush1.bf16.msra.mxu0 0
    %1835 = vmatprep.subr.bf16.mxu0 0
    %1836 = vmatpush1.bf16.msra.mxu0 0
    %1837 = vmatprep.subr.bf16.mxu0 0
    %1838 = vmatpush1.bf16.msra.mxu0 0
    %1839 = vmatprep.subr.bf16.mxu0 0
    %1840 = vmatpush1.bf16.msra.mxu0 0
    %1841 = vmatprep.subr.bf16.mxu0 0
    %1842 = vmatpush1.bf16.msra.mxu0 0
    %1843 = vmatprep.mubr.bf16.mxu0 0
    %1844 = vmatmul.mubr.bf16.gmra.mrb[0].mxu0 %v503
    %v1845 = vpop.f32.mrb[0].mxu0
    %v1846 = vadd.f32 %v1733, %v1845
    %v1847 = vpop.f32.mrb[0].mxu0
    %v1848 = vadd.f32 %v1735, %v1847
    %v1849 = vpop.f32.mrb[0].mxu0
    %v1850 = vadd.f32 %v1737, %v1849
    %v1851 = vpop.f32.mrb[0].mxu0
    %v1852 = vadd.f32 %v1739, %v1851
    %1853 = vmatprep.mubr.bf16.mxu0 0
    %1854 = vmatmul.mubr.bf16.gmra.mrb[0].mxu0 %v512
    %v1855 = vpop.f32.mrb[0].mxu0
    %v1856 = vadd.f32 %v1743, %v1855
    %v1857 = vpop.f32.mrb[0].mxu0
    %v1858 = vadd.f32 %v1745, %v1857
    %v1859 = vpop.f32.mrb[0].mxu0
    %v1860 = vadd.f32 %v1747, %v1859
    %v1861 = vpop.f32.mrb[0].mxu0
    %v1862 = vadd.f32 %v1749, %v1861
    %1863 = vmatprep.mubr.bf16.mxu0 0
    %1864 = vmatmul.mubr.bf16.gmra.mrb[0].mxu0 %v521
    %v1865 = vpop.f32.mrb[0].mxu0
    %v1866 = vadd.f32 %v1753, %v1865
    %v1867 = vpop.f32.mrb[0].mxu0
    %v1868 = vadd.f32 %v1755, %v1867
    %v1869 = vpop.f32.mrb[0].mxu0
    %v1870 = vadd.f32 %v1757, %v1869
    %v1871 = vpop.f32.mrb[0].mxu0
    %v1872 = vadd.f32 %v1759, %v1871
    %1873 = vmatprep.mubr.bf16.mxu0 0
    %1874 = vmatmul.mubr.bf16.gmra.mrb[0].mxu0 %v530
    %v1875 = vpop.f32.mrb[0].mxu0
    %v1876 = vadd.f32 %v1763, %v1875
    %v1877 = vpop.f32.mrb[0].mxu0
    %v1878 = vadd.f32 %v1765, %v1877
    %v1879 = vpop.f32.mrb[0].mxu0
    %v1880 = vadd.f32 %v1767, %v1879
    %v1881 = vpop.f32.mrb[0].mxu0
    %v1882 = vadd.f32 %v1769, %v1881
    %1883 = vmatprep.mubr.bf16.mxu0 0
    %1884 = vmatmul.mubr.bf16.gmra.mrb[0].mxu0 %v539
    %v1885 = vpop.f32.mrb[0].mxu0
    %v1886 = vadd.f32 %v1773, %v1885
    %v1887 = vpop.f32.mrb[0].mxu0
    %v1888 = vadd.f32 %v1775, %v1887
    %v1889 = vpop.f32.mrb[0].mxu0
    %v1890 = vadd.f32 %v1777, %v1889
    %v1891 = vpop.f32.mrb[0].mxu0
    %v1892 = vadd.f32 %v1779, %v1891
    %1893 = vmatprep.mubr.bf16.mxu0 0
    %1894 = vmatmul.mubr.bf16.gmra.mrb[0].mxu0 %v548
    %v1895 = vpop.f32.mrb[0].mxu0
    %v1896 = vadd.f32 %v1783, %v1895
    %v1897 = vpop.f32.mrb[0].mxu0
    %v1898 = vadd.f32 %v1785, %v1897
    %v1899 = vpop.f32.mrb[0].mxu0
    %v1900 = vadd.f32 %v1787, %v1899
    %v1901 = vpop.f32.mrb[0].mxu0
    %v1902 = vadd.f32 %v1789, %v1901
    %1903 = vmatprep.mubr.bf16.mxu0 0
    %1904 = vmatmul.mubr.bf16.gmra.mrb[0].mxu0 %v557
    %v1905 = vpop.f32.mrb[0].mxu0
    %v1906 = vadd.f32 %v1793, %v1905
    %v1907 = vpop.f32.mrb[0].mxu0
    %v1908 = vadd.f32 %v1795, %v1907
    %v1909 = vpop.f32.mrb[0].mxu0
    %v1910 = vadd.f32 %v1797, %v1909
    %v1911 = vpop.f32.mrb[0].mxu0
    %v1912 = vadd.f32 %v1799, %v1911
    %1913 = vmatprep.mubr.bf16.mxu0 0
    %1914 = vmatmul.mubr.bf16.gmra.mrb[0].mxu0 %v566
    %v1915 = vpop.f32.mrb[0].mxu0
    %v1916 = vadd.f32 %v1803, %v1915
    %v1917 = vpop.f32.mrb[0].mxu0
    %v1918 = vadd.f32 %v1805, %v1917
    %v1919 = vpop.f32.mrb[0].mxu0
    %v1920 = vadd.f32 %v1807, %v1919
    %v1921 = vpop.f32.mrb[0].mxu0
    %v1922 = vadd.f32 %v1809, %v1921
    %1923 = vdwg.mxu0
    %1924 = vst [vmem:[#allocation2] sm:$0xff] %v1846
    %1925 = vst [vmem:[#allocation2 + $0x8] sm:$0xff] %v1848
    %1926 = vst [vmem:[#allocation2 + $0x10] sm:$0xff] %v1850
    %1927 = vst [vmem:[#allocation2 + $0x18] sm:$0xff] %v1852
    %1928 = vst [vmem:[#allocation2 + $0x20] sm:$0xff] %v1856
    %1929 = vst [vmem:[#allocation2 + $0x28] sm:$0xff] %v1858
    %1930 = vst [vmem:[#allocation2 + $0x30] sm:$0xff] %v1860
    %1931 = vst [vmem:[#allocation2 + $0x38] sm:$0xff] %v1862
    %1932 = vst [vmem:[#allocation2 + $0x40] sm:$0xff] %v1866
    %1933 = vst [vmem:[#allocation2 + $0x48] sm:$0xff] %v1868
    %1934 = vst [vmem:[#allocation2 + $0x50] sm:$0xff] %v1870
    %1935 = vst [vmem:[#allocation2 + $0x58] sm:$0xff] %v1872
    %1936 = vst [vmem:[#allocation2 + $0x60] sm:$0xff] %v1876
    %1937 = vst [vmem:[#allocation2 + $0x68] sm:$0xff] %v1878
    %1938 = vst [vmem:[#allocation2 + $0x70] sm:$0xff] %v1880
    %1939 = vst [vmem:[#allocation2 + $0x78] sm:$0xff] %v1882
    %1940 = vst [vmem:[#allocation2 + $0x80] sm:$0xff] %v1886
    %1941 = vst [vmem:[#allocation2 + $0x88] sm:$0xff] %v1888
    %1942 = vst [vmem:[#allocation2 + $0x90] sm:$0xff] %v1890
    %1943 = vst [vmem:[#allocation2 + $0x98] sm:$0xff] %v1892
    %1944 = vst [vmem:[#allocation2 + $0xa0] sm:$0xff] %v1896
    %1945 = vst [vmem:[#allocation2 + $0xa8] sm:$0xff] %v1898
    %1946 = vst [vmem:[#allocation2 + $0xb0] sm:$0xff] %v1900
    %1947 = vst [vmem:[#allocation2 + $0xb8] sm:$0xff] %v1902
    %1948 = vst [vmem:[#allocation2 + $0xc0] sm:$0xff] %v1906
    %1949 = vst [vmem:[#allocation2 + $0xc8] sm:$0xff] %v1908
    %1950 = vst [vmem:[#allocation2 + $0xd0] sm:$0xff] %v1910
    %1951 = vst [vmem:[#allocation2 + $0xd8] sm:$0xff] %v1912
    %1952 = vst [vmem:[#allocation2 + $0xe0] sm:$0xff] %v1916
    %1953 = vst [vmem:[#allocation2 + $0xe8] sm:$0xff] %v1918
    %1954 = vst [vmem:[#allocation2 + $0xf0] sm:$0xff] %v1920
    %1955 = vst [vmem:[#allocation2 + $0xf8] sm:$0xff] %v1922
    %v1956 = vld [vmem:[#allocation2] sm:$0xff]
    %v1957 = vld [vmem:[#allocation2 + $0x8] sm:$0xff]
    %v1958 = vld [vmem:[#allocation2 + $0x10] sm:$0xff]
    %v1959 = vld [vmem:[#allocation2 + $0x18] sm:$0xff]
    %v1960 = vld [vmem:[#allocation2 + $0x20] sm:$0xff]
    %v1961 = vld [vmem:[#allocation2 + $0x28] sm:$0xff]
    %v1962 = vld [vmem:[#allocation2 + $0x30] sm:$0xff]
    %v1963 = vld [vmem:[#allocation2 + $0x38] sm:$0xff]
    %v1964 = vadd.f32 %v1956, %v1958
    %v1965 = vadd.f32 %v1964, %v1960
    %v1966 = vadd.f32 %v1965, %v1962
    %v1967 = vrot.slane %v1966, 4
    %v1968 = vadd.f32 %v1966, %v1967
    %v1969 = vrot.slane %v1968, 2
    %v1970 = vadd.f32 %v1968, %v1969
    %v1971 = vrot.slane %v1970, 1
    %v1972 = vadd.f32 %v1970, %v1971
    %v1973 = vadd.f32 %v1957, %v1959
    %v1974 = vadd.f32 %v1973, %v1961
    %v1975 = vadd.f32 %v1974, %v1963
    %v1976 = vrot.slane %v1975, 4
    %v1977 = vadd.f32 %v1975, %v1976
    %v1978 = vrot.slane %v1977, 2
    %v1979 = vadd.f32 %v1977, %v1978
    %v1980 = vrot.slane %v1979, 1
    %v1981 = vadd.f32 %v1979, %v1980
    %v1982 = vadd.f32 %v1972, 0.0
    %v1983 = vadd.f32 %v1981, 0.0
    %v1984 = vmul.f32 %v1956, %v1956
    %v1985 = vmul.f32 %v1957, %v1957
    %v1986 = vmul.f32 %v1958, %v1958
    %v1987 = vmul.f32 %v1959, %v1959
    %v1988 = vmul.f32 %v1960, %v1960
    %v1989 = vmul.f32 %v1961, %v1961
    %v1990 = vmul.f32 %v1962, %v1962
    %v1991 = vmul.f32 %v1963, %v1963
    %v1992 = vadd.f32 %v1984, %v1986
    %v1993 = vadd.f32 %v1992, %v1988
    %v1994 = vadd.f32 %v1993, %v1990
    %v1995 = vrot.slane %v1994, 4
    %v1996 = vadd.f32 %v1994, %v1995
    %v1997 = vrot.slane %v1996, 2
    %v1998 = vadd.f32 %v1996, %v1997
    %v1999 = vrot.slane %v1998, 1
    %v2000 = vadd.f32 %v1998, %v1999
    %v2001 = vadd.f32 %v1985, %v1987
    %v2002 = vadd.f32 %v2001, %v1989
    %v2003 = vadd.f32 %v2002, %v1991
    %v2004 = vrot.slane %v2003, 4
    %v2005 = vadd.f32 %v2003, %v2004
    %v2006 = vrot.slane %v2005, 2
    %v2007 = vadd.f32 %v2005, %v2006
    %v2008 = vrot.slane %v2007, 1
    %v2009 = vadd.f32 %v2007, %v2008
    %v2010 = vadd.f32 %v2000, 0.0
    %v2011 = vadd.f32 %v2009, 0.0
    %v2012 = vld [vmem:[#allocation2 + $0x40] sm:$0xff]
    %v2013 = vld [vmem:[#allocation2 + $0x48] sm:$0xff]
    %v2014 = vld [vmem:[#allocation2 + $0x50] sm:$0xff]
    %v2015 = vld [vmem:[#allocation2 + $0x58] sm:$0xff]
    %v2016 = vld [vmem:[#allocation2 + $0x60] sm:$0xff]
    %v2017 = vld [vmem:[#allocation2 + $0x68] sm:$0xff]
    %v2018 = vld [vmem:[#allocation2 + $0x70] sm:$0xff]
    %v2019 = vld [vmem:[#allocation2 + $0x78] sm:$0xff]
    %v2020 = vadd.f32 %v2012, %v2014
    %v2021 = vadd.f32 %v2020, %v2016
    %v2022 = vadd.f32 %v2021, %v2018
    %v2023 = vrot.slane %v2022, 4
    %v2024 = vadd.f32 %v2022, %v2023
    %v2025 = vrot.slane %v2024, 2
    %v2026 = vadd.f32 %v2024, %v2025
    %v2027 = vrot.slane %v2026, 1
    %v2028 = vadd.f32 %v2026, %v2027
    %v2029 = vadd.f32 %v2013, %v2015
    %v2030 = vadd.f32 %v2029, %v2017
    %v2031 = vadd.f32 %v2030, %v2019
    %v2032 = vrot.slane %v2031, 4
    %v2033 = vadd.f32 %v2031, %v2032
    %v2034 = vrot.slane %v2033, 2
    %v2035 = vadd.f32 %v2033, %v2034
    %v2036 = vrot.slane %v2035, 1
    %v2037 = vadd.f32 %v2035, %v2036
    %v2038 = vadd.f32 %v1982, %v2028
    %v2039 = vadd.f32 %v1983, %v2037
    %v2040 = vmul.f32 %v2012, %v2012
    %v2041 = vmul.f32 %v2013, %v2013
    %v2042 = vmul.f32 %v2014, %v2014
    %v2043 = vmul.f32 %v2015, %v2015
    %v2044 = vmul.f32 %v2016, %v2016
    %v2045 = vmul.f32 %v2017, %v2017
    %v2046 = vmul.f32 %v2018, %v2018
    %v2047 = vmul.f32 %v2019, %v2019
    %v2048 = vadd.f32 %v2040, %v2042
    %v2049 = vadd.f32 %v2048, %v2044
    %v2050 = vadd.f32 %v2049, %v2046
    %v2051 = vrot.slane %v2050, 4
    %v2052 = vadd.f32 %v2050, %v2051
    %v2053 = vrot.slane %v2052, 2
    %v2054 = vadd.f32 %v2052, %v2053
    %v2055 = vrot.slane %v2054, 1
    %v2056 = vadd.f32 %v2054, %v2055
    %v2057 = vadd.f32 %v2041, %v2043
    %v2058 = vadd.f32 %v2057, %v2045
    %v2059 = vadd.f32 %v2058, %v2047
    %v2060 = vrot.slane %v2059, 4
    %v2061 = vadd.f32 %v2059, %v2060
    %v2062 = vrot.slane %v2061, 2
    %v2063 = vadd.f32 %v2061, %v2062
    %v2064 = vrot.slane %v2063, 1
    %v2065 = vadd.f32 %v2063, %v2064
    %v2066 = vadd.f32 %v2010, %v2056
    %v2067 = vadd.f32 %v2011, %v2065
    %v2068 = vld [vmem:[#allocation2 + $0x80] sm:$0xff]
    %v2069 = vld [vmem:[#allocation2 + $0x88] sm:$0xff]
    %v2070 = vld [vmem:[#allocation2 + $0x90] sm:$0xff]
    %v2071 = vld [vmem:[#allocation2 + $0x98] sm:$0xff]
    %v2072 = vld [vmem:[#allocation2 + $0xa0] sm:$0xff]
    %v2073 = vld [vmem:[#allocation2 + $0xa8] sm:$0xff]
    %v2074 = vld [vmem:[#allocation2 + $0xb0] sm:$0xff]
    %v2075 = vld [vmem:[#allocation2 + $0xb8] sm:$0xff]
    %v2076 = vadd.f32 %v2068, %v2070
    %v2077 = vadd.f32 %v2076, %v2072
    %v2078 = vadd.f32 %v2077, %v2074
    %v2079 = vrot.slane %v2078, 4
    %v2080 = vadd.f32 %v2078, %v2079
    %v2081 = vrot.slane %v2080, 2
    %v2082 = vadd.f32 %v2080, %v2081
    %v2083 = vrot.slane %v2082, 1
    %v2084 = vadd.f32 %v2082, %v2083
    %v2085 = vadd.f32 %v2069, %v2071
    %v2086 = vadd.f32 %v2085, %v2073
    %v2087 = vadd.f32 %v2086, %v2075
    %v2088 = vrot.slane %v2087, 4
    %v2089 = vadd.f32 %v2087, %v2088
    %v2090 = vrot.slane %v2089, 2
    %v2091 = vadd.f32 %v2089, %v2090
    %v2092 = vrot.slane %v2091, 1
    %v2093 = vadd.f32 %v2091, %v2092
    %v2094 = vadd.f32 %v2038, %v2084
    %v2095 = vadd.f32 %v2039, %v2093
    %v2096 = vmul.f32 %v2068, %v2068
    %v2097 = vmul.f32 %v2069, %v2069
    %v2098 = vmul.f32 %v2070, %v2070
    %v2099 = vmul.f32 %v2071, %v2071
    %v2100 = vmul.f32 %v2072, %v2072
    %v2101 = vmul.f32 %v2073, %v2073
    %v2102 = vmul.f32 %v2074, %v2074
    %v2103 = vmul.f32 %v2075, %v2075
    %v2104 = vadd.f32 %v2096, %v2098
    %v2105 = vadd.f32 %v2104, %v2100
    %v2106 = vadd.f32 %v2105, %v2102
    %v2107 = vrot.slane %v2106, 4
    %v2108 = vadd.f32 %v2106, %v2107
    %v2109 = vrot.slane %v2108, 2
    %v2110 = vadd.f32 %v2108, %v2109
    %v2111 = vrot.slane %v2110, 1
    %v2112 = vadd.f32 %v2110, %v2111
    %v2113 = vadd.f32 %v2097, %v2099
    %v2114 = vadd.f32 %v2113, %v2101
    %v2115 = vadd.f32 %v2114, %v2103
    %v2116 = vrot.slane %v2115, 4
    %v2117 = vadd.f32 %v2115, %v2116
    %v2118 = vrot.slane %v2117, 2
    %v2119 = vadd.f32 %v2117, %v2118
    %v2120 = vrot.slane %v2119, 1
    %v2121 = vadd.f32 %v2119, %v2120
    %v2122 = vadd.f32 %v2066, %v2112
    %v2123 = vadd.f32 %v2067, %v2121
    %v2124 = vld [vmem:[#allocation2 + $0xc0] sm:$0xff]
    %v2125 = vld [vmem:[#allocation2 + $0xc8] sm:$0xff]
    %v2126 = vld [vmem:[#allocation2 + $0xd0] sm:$0xff]
    %v2127 = vld [vmem:[#allocation2 + $0xd8] sm:$0xff]
    %v2128 = vld [vmem:[#allocation2 + $0xe0] sm:$0xff]
    %v2129 = vld [vmem:[#allocation2 + $0xe8] sm:$0xff]
    %v2130 = vld [vmem:[#allocation2 + $0xf0] sm:$0xff]
    %v2131 = vld [vmem:[#allocation2 + $0xf8] sm:$0xff]
    %v2132 = vadd.f32 %v2124, %v2126
    %v2133 = vadd.f32 %v2132, %v2128
    %v2134 = vadd.f32 %v2133, %v2130
    %v2135 = vrot.slane %v2134, 4
    %v2136 = vadd.f32 %v2134, %v2135
    %v2137 = vrot.slane %v2136, 2
    %v2138 = vadd.f32 %v2136, %v2137
    %v2139 = vrot.slane %v2138, 1
    %v2140 = vadd.f32 %v2138, %v2139
    %v2141 = vadd.f32 %v2125, %v2127
    %v2142 = vadd.f32 %v2141, %v2129
    %v2143 = vadd.f32 %v2142, %v2131
    %v2144 = vrot.slane %v2143, 4
    %v2145 = vadd.f32 %v2143, %v2144
    %v2146 = vrot.slane %v2145, 2
    %v2147 = vadd.f32 %v2145, %v2146
    %v2148 = vrot.slane %v2147, 1
    %v2149 = vadd.f32 %v2147, %v2148
    %v2150 = vadd.f32 %v2094, %v2140
    %v2151 = vadd.f32 %v2095, %v2149
    %v2152 = vmul.f32 %v2124, %v2124
    %v2153 = vmul.f32 %v2125, %v2125
    %v2154 = vmul.f32 %v2126, %v2126
    %v2155 = vmul.f32 %v2127, %v2127
    %v2156 = vmul.f32 %v2128, %v2128
    %v2157 = vmul.f32 %v2129, %v2129
    %v2158 = vmul.f32 %v2130, %v2130
    %v2159 = vmul.f32 %v2131, %v2131
    %v2160 = vadd.f32 %v2152, %v2154
    %v2161 = vadd.f32 %v2160, %v2156
    %v2162 = vadd.f32 %v2161, %v2158
    %v2163 = vrot.slane %v2162, 4
    %v2164 = vadd.f32 %v2162, %v2163
    %v2165 = vrot.slane %v2164, 2
    %v2166 = vadd.f32 %v2164, %v2165
    %v2167 = vrot.slane %v2166, 1
    %v2168 = vadd.f32 %v2166, %v2167
    %v2169 = vadd.f32 %v2153, %v2155
    %v2170 = vadd.f32 %v2169, %v2157
    %v2171 = vadd.f32 %v2170, %v2159
    %v2172 = vrot.slane %v2171, 4
    %v2173 = vadd.f32 %v2171, %v2172
    %v2174 = vrot.slane %v2173, 2
    %v2175 = vadd.f32 %v2173, %v2174
    %v2176 = vrot.slane %v2175, 1
    %v2177 = vadd.f32 %v2175, %v2176
    %v2178 = vadd.f32 %v2122, %v2168
    %v2179 = vadd.f32 %v2123, %v2177
    %v2180 = vmul.f32 %v2150, 0.0078125
    %v2181 = vmul.f32 %v2151, 0.0078125
    %v2182 = vmul.f32 %v2178, 0.0078125
    %v2183 = vmul.f32 %v2179, 0.0078125
    %v2184 = vmul.f32 %v2180, %v2180
    %v2185 = vmul.f32 %v2181, %v2181
    %v2186 = vsub.f32 %v2182, %v2184
    %v2187 = vsub.f32 %v2183, %v2185
    %v2188 = vld [vmem:[%s2] sm:$0x3]
    %v2189 = vadd.f32 %v2186, 1e-05
    %v2190 = vadd.f32 %v2187, 1e-05
    %v2191 = vrsqrt.pop %v2189
    %v2192 = vrsqrt.pop %v2190
    %v2195 = vcombine.low %v2191, %v2192
    %v2197 = vunpack.c.l.s4 1966171168
    %v2198 = vunpack.c.0.s8 %v2197
    %v2199 = vlaneseq
    %v2200 = vshrl.u32 %v2199, 7
    %v2201 = vsub.s32 %v2198, %v2200
    %v2202 = vrot.slane %v2195, %v2201
    %v2204 = vunpack.c.l.s4 1966171168
    %v2205 = vunpack.c.0.s8 %v2204
    %v2206 = vlaneseq
    %v2207 = vshrl.u32 %v2206, 7
    %v2208 = vsub.s32 %v2205, %v2207
    %v2209 = vrot.slane %v2202, %v2208
    %v2211 = vmul.f32 %v2188, %v2209
    %v2212 = vld [vmem:[%s3] sm:$0x3]
    %v2214 = vlaneseq
    %v2215 = vshrl.u32 %v2214, 7
    %v2216 = vsub.s32 0, %v2215
    %v2217 = vrot.slane %v2211, %v2216
    %v2218 = vlaneseq
    %v2219 = vshrl.u32 %v2218, 7
    %v2220 = vsub.s32 1, %v2219
    %v2221 = vrot.slane %v2211, %v2220
    %v2224 = vmul.f32 %v2180, %v2217
    %v2225 = vmul.f32 %v2181, %v2221
    %v2228 = vcombine.low %v2224, %v2225
    %v2230 = vunpack.c.l.s4 1966171168
    %v2231 = vunpack.c.0.s8 %v2230
    %v2232 = vlaneseq
    %v2233 = vshrl.u32 %v2232, 7
    %v2234 = vsub.s32 %v2231, %v2233
    %v2235 = vrot.slane %v2228, %v2234
    %v2237 = vunpack.c.l.s4 1966171168
    %v2238 = vunpack.c.0.s8 %v2237
    %v2239 = vlaneseq
    %v2240 = vshrl.u32 %v2239, 7
    %v2241 = vsub.s32 %v2238, %v2240
    %v2242 = vrot.slane %v2235, %v2241
    %v2244 = vsub.f32 %v2212, %v2242
    %v2245 = vld [vmem:[#allocation2] sm:$0xff]
    %v2246 = vld [vmem:[#allocation2 + $0x8] sm:$0xff]
    %v2247 = vld [vmem:[#allocation2 + $0x10] sm:$0xff]
    %v2248 = vld [vmem:[#allocation2 + $0x18] sm:$0xff]
    %v2249 = vld [vmem:[#allocation2 + $0x20] sm:$0xff]
    %v2250 = vld [vmem:[#allocation2 + $0x28] sm:$0xff]
    %v2251 = vld [vmem:[#allocation2 + $0x30] sm:$0xff]
    %v2252 = vld [vmem:[#allocation2 + $0x38] sm:$0xff]
    %v2253 = vld [vmem:[#allocation2 + $0x40] sm:$0xff]
    %v2254 = vld [vmem:[#allocation2 + $0x48] sm:$0xff]
    %v2255 = vld [vmem:[#allocation2 + $0x50] sm:$0xff]
    %v2256 = vld [vmem:[#allocation2 + $0x58] sm:$0xff]
    %v2257 = vld [vmem:[#allocation2 + $0x60] sm:$0xff]
    %v2258 = vld [vmem:[#allocation2 + $0x68] sm:$0xff]
    %v2259 = vld [vmem:[#allocation2 + $0x70] sm:$0xff]
    %v2260 = vld [vmem:[#allocation2 + $0x78] sm:$0xff]
    %v2261 = vld [vmem:[#allocation2 + $0x80] sm:$0xff]
    %v2262 = vld [vmem:[#allocation2 + $0x88] sm:$0xff]
    %v2263 = vld [vmem:[#allocation2 + $0x90] sm:$0xff]
    %v2264 = vld [vmem:[#allocation2 + $0x98] sm:$0xff]
    %v2265 = vld [vmem:[#allocation2 + $0xa0] sm:$0xff]
    %v2266 = vld [vmem:[#allocation2 + $0xa8] sm:$0xff]
    %v2267 = vld [vmem:[#allocation2 + $0xb0] sm:$0xff]
    %v2268 = vld [vmem:[#allocation2 + $0xb8] sm:$0xff]
    %v2269 = vmul.f32 %v2245, %v2217
    %v2270 = vmul.f32 %v2246, %v2221
    %v2271 = vmul.f32 %v2247, %v2217
    %v2272 = vmul.f32 %v2248, %v2221
    %v2273 = vmul.f32 %v2249, %v2217
    %v2274 = vmul.f32 %v2250, %v2221
    %v2275 = vmul.f32 %v2251, %v2217
    %v2276 = vmul.f32 %v2252, %v2221
    %v2277 = vmul.f32 %v2253, %v2217
    %v2278 = vmul.f32 %v2254, %v2221
    %v2279 = vmul.f32 %v2255, %v2217
    %v2280 = vmul.f32 %v2256, %v2221
    %v2281 = vmul.f32 %v2257, %v2217
    %v2282 = vmul.f32 %v2258, %v2221
    %v2283 = vmul.f32 %v2259, %v2217
    %v2284 = vmul.f32 %v2260, %v2221
    %v2285 = vmul.f32 %v2261, %v2217
    %v2286 = vmul.f32 %v2262, %v2221
    %v2287 = vmul.f32 %v2263, %v2217
    %v2288 = vmul.f32 %v2264, %v2221
    %v2289 = vmul.f32 %v2265, %v2217
    %v2290 = vmul.f32 %v2266, %v2221
    %v2291 = vmul.f32 %v2267, %v2217
    %v2292 = vmul.f32 %v2268, %v2221
    %v2293 = vmul.f32 %v2124, %v2217
    %v2294 = vmul.f32 %v2125, %v2221
    %v2295 = vmul.f32 %v2126, %v2217
    %v2296 = vmul.f32 %v2127, %v2221
    %v2297 = vmul.f32 %v2128, %v2217
    %v2298 = vmul.f32 %v2129, %v2221
    %v2299 = vmul.f32 %v2130, %v2217
    %v2300 = vmul.f32 %v2131, %v2221
    %v2302 = vlaneseq
    %v2303 = vshrl.u32 %v2302, 7
    %v2304 = vsub.s32 0, %v2303
    %v2305 = vrot.slane %v2244, %v2304
    %v2306 = vlaneseq
    %v2307 = vshrl.u32 %v2306, 7
    %v2308 = vsub.s32 1, %v2307
    %v2309 = vrot.slane %v2244, %v2308
    %v2312 = vadd.f32 %v2269, %v2305
    %v2313 = vadd.f32 %v2270, %v2309
    %v2314 = vadd.f32 %v2271, %v2305
    %v2315 = vadd.f32 %v2272, %v2309
    %v2316 = vadd.f32 %v2273, %v2305
    %v2317 = vadd.f32 %v2274, %v2309
    %v2318 = vadd.f32 %v2275, %v2305
    %v2319 = vadd.f32 %v2276, %v2309
    %v2320 = vadd.f32 %v2277, %v2305
    %v2321 = vadd.f32 %v2278, %v2309
    %v2322 = vadd.f32 %v2279, %v2305
    %v2323 = vadd.f32 %v2280, %v2309
    %v2324 = vadd.f32 %v2281, %v2305
    %v2325 = vadd.f32 %v2282, %v2309
    %v2326 = vadd.f32 %v2283, %v2305
    %v2327 = vadd.f32 %v2284, %v2309
    %v2328 = vadd.f32 %v2285, %v2305
    %v2329 = vadd.f32 %v2286, %v2309
    %v2330 = vadd.f32 %v2287, %v2305
    %v2331 = vadd.f32 %v2288, %v2309
    %v2332 = vadd.f32 %v2289, %v2305
    %v2333 = vadd.f32 %v2290, %v2309
    %v2334 = vadd.f32 %v2291, %v2305
    %v2335 = vadd.f32 %v2292, %v2309
    %v2336 = vadd.f32 %v2293, %v2305
    %v2337 = vadd.f32 %v2294, %v2309
    %v2338 = vadd.f32 %v2295, %v2305
    %v2339 = vadd.f32 %v2296, %v2309
    %v2340 = vadd.f32 %v2297, %v2305
    %v2341 = vadd.f32 %v2298, %v2309
    %v2342 = vadd.f32 %v2299, %v2305
    %v2343 = vadd.f32 %v2300, %v2309
    %v2344 = vmax.f32 %v2312, 0.0
    %v2345 = vmax.f32 %v2313, 0.0
    %v2346 = vmax.f32 %v2314, 0.0
    %v2347 = vmax.f32 %v2315, 0.0
    %v2348 = vmax.f32 %v2316, 0.0
    %v2349 = vmax.f32 %v2317, 0.0
    %v2350 = vmax.f32 %v2318, 0.0
    %v2351 = vmax.f32 %v2319, 0.0
    %v2352 = vmax.f32 %v2320, 0.0
    %v2353 = vmax.f32 %v2321, 0.0
    %v2354 = vmax.f32 %v2322, 0.0
    %v2355 = vmax.f32 %v2323, 0.0
    %v2356 = vmax.f32 %v2324, 0.0
    %v2357 = vmax.f32 %v2325, 0.0
    %v2358 = vmax.f32 %v2326, 0.0
    %v2359 = vmax.f32 %v2327, 0.0
    %v2360 = vmax.f32 %v2328, 0.0
    %v2361 = vmax.f32 %v2329, 0.0
    %v2362 = vmax.f32 %v2330, 0.0
    %v2363 = vmax.f32 %v2331, 0.0
    %v2364 = vmax.f32 %v2332, 0.0
    %v2365 = vmax.f32 %v2333, 0.0
    %v2366 = vmax.f32 %v2334, 0.0
    %v2367 = vmax.f32 %v2335, 0.0
    %v2368 = vmax.f32 %v2336, 0.0
    %v2369 = vmax.f32 %v2337, 0.0
    %v2370 = vmax.f32 %v2338, 0.0
    %v2371 = vmax.f32 %v2339, 0.0
    %v2372 = vmax.f32 %v2340, 0.0
    %v2373 = vmax.f32 %v2341, 0.0
    %v2374 = vmax.f32 %v2342, 0.0
    %v2375 = vmax.f32 %v2343, 0.0
    %2376 = vst [vmem:[#allocation8] sm:$0xff] %v2344
    %2377 = vst [vmem:[#allocation8 + $0x8] sm:$0xff] %v2345
    %2378 = vst [vmem:[#allocation8 + $0x10] sm:$0xff] %v2346
    %2379 = vst [vmem:[#allocation8 + $0x18] sm:$0xff] %v2347
    %2380 = vst [vmem:[#allocation8 + $0x20] sm:$0xff] %v2348
    %2381 = vst [vmem:[#allocation8 + $0x28] sm:$0xff] %v2349
    %2382 = vst [vmem:[#allocation8 + $0x30] sm:$0xff] %v2350
    %2383 = vst [vmem:[#allocation8 + $0x38] sm:$0xff] %v2351
    %2384 = vst [vmem:[#allocation8 + $0x40] sm:$0xff] %v2352
    %2385 = vst [vmem:[#allocation8 + $0x48] sm:$0xff] %v2353
    %2386 = vst [vmem:[#allocation8 + $0x50] sm:$0xff] %v2354
    %2387 = vst [vmem:[#allocation8 + $0x58] sm:$0xff] %v2355
    %2388 = vst [vmem:[#allocation8 + $0x60] sm:$0xff] %v2356
    %2389 = vst [vmem:[#allocation8 + $0x68] sm:$0xff] %v2357
    %2390 = vst [vmem:[#allocation8 + $0x70] sm:$0xff] %v2358
    %2391 = vst [vmem:[#allocation8 + $0x78] sm:$0xff] %v2359
    %2392 = vst [vmem:[#allocation8 + $0x80] sm:$0xff] %v2360
    %2393 = vst [vmem:[#allocation8 + $0x88] sm:$0xff] %v2361
    %2394 = vst [vmem:[#allocation8 + $0x90] sm:$0xff] %v2362
    %2395 = vst [vmem:[#allocation8 + $0x98] sm:$0xff] %v2363
    %2396 = vst [vmem:[#allocation8 + $0xa0] sm:$0xff] %v2364
    %2397 = vst [vmem:[#allocation8 + $0xa8] sm:$0xff] %v2365
    %2398 = vst [vmem:[#allocation8 + $0xb0] sm:$0xff] %v2366
    %2399 = vst [vmem:[#allocation8 + $0xb8] sm:$0xff] %v2367
    %2400 = vst [vmem:[#allocation8 + $0xc0] sm:$0xff] %v2368
    %2401 = vst [vmem:[#allocation8 + $0xc8] sm:$0xff] %v2369
    %2402 = vst [vmem:[#allocation8 + $0xd0] sm:$0xff] %v2370
    %2403 = vst [vmem:[#allocation8 + $0xd8] sm:$0xff] %v2371
    %2404 = vst [vmem:[#allocation8 + $0xe0] sm:$0xff] %v2372
    %2405 = vst [vmem:[#allocation8 + $0xe8] sm:$0xff] %v2373
    %2406 = vst [vmem:[#allocation8 + $0xf0] sm:$0xff] %v2374
    %2407 = vst [vmem:[#allocation8 + $0xf8] sm:$0xff] %v2375
    // Predicated region
    $region26: #{tpu_custom_call.1} parent=1 // pred_check
      _
    $region27: #{tpu_custom_call.1} parent=1 // pred_check_branch
      %2409 = sbr.rel (0) target = $region29
    $region28: #{tpu_custom_call.1} parent=1 // pred_region
      %s2411 = ssub.s32 4096, 4096
      %2412 = vsyncadd [#allocation5], %s2411
      %s2413 = sshll.u32 [#allocation8], 4
      %s2414 = int_to_ptr.vmem [resolvable:$true] %s2413
      %2419 = dma.vmem_to_hbm [thread:$0]  %s2414, 4096, %s4, [#allocation5], 256, 256, 16
    $region29: #{tpu_custom_call.1} parent=1 // pred_fallthru
      _
    // Predicated region
    $region30: #{tpu_custom_call.1} parent=1 // pred_check
      _
    $region31: #{tpu_custom_call.1} parent=1 // pred_check_branch
      %2421 = sbr.rel (0) target = $region33
    $region32: #{tpu_custom_call.1} parent=1 // pred_region
      %2422 = dma.done [#allocation5], 4096
    $region33: #{tpu_custom_call.1} parent=1 // pred_fallthru
      _
    %2423 = vsyncpa [#allocation4], 1
    %2424 = vsyncpa [#allocation7], 1
    %2425 = vsyncpa [#allocation5], 1

</llo_original>
